<compile_context>
chip_gen: v5e
topology: v5e:2x2
jax: 0.10.0
libtpu: 0.0.40
codegen_flags: <defaults>
</compile_context>

<pallas_src>
import math
import functools

import jax
import jax.numpy as jnp
from jax.experimental import pallas as pl
from jax.experimental.pallas import tpu as pltpu

EPS = 1e-5


def _layernorm(x, w, b):
    mu = jnp.mean(x, axis=-1, keepdims=True)
    xc = x - mu
    var = jnp.mean(xc * xc, axis=-1, keepdims=True)
    return xc * jax.lax.rsqrt(var + EPS) * w + b


def _gelu_exact(x):
    # matches torch.nn.GELU() default (erf form)
    return 0.5 * x * (1.0 + jax.lax.erf(x * (1.0 / math.sqrt(2.0))))


def full_block_kernel(x_ref,
                      ln1_w_ref, ln1_b_ref, ln2_w_ref, ln2_b_ref,
                      wqkv_ref, bqkv_ref, wo_ref, bo_ref,
                      w1_ref, b1_ref, w2_ref, b2_ref,
                      o_ref, *, n_head, compute_dtype, approx_recip):
    x = x_ref[...].astype(jnp.float32)              # (T, C) — one batch element
    T, C = x.shape
    hd = C // n_head
    scale = 1.0 / math.sqrt(hd)
    cd = compute_dtype

    # ---------------- attention branch: x + attn(ln1(x)) ----------------
    h = _layernorm(x, ln1_w_ref[...], ln1_b_ref[...])

    # Fused QKV projection: one (T,C) x (C,3C) MXU matmul; cd operands, f32 acc.
    qkv = jnp.dot(h.astype(cd), wqkv_ref[...],
                  preferred_element_type=jnp.float32) + bqkv_ref[...]
    q = qkv[:, :C] * scale                          # fold 1/sqrt(hd) into q
    k = qkv[:, C:2 * C]
    v = qkv[:, 2 * C:]

    # Head-major (H, T, hd) layout: single reshape + one lane-aware relayout
    # each (no per-head slice/stack/concat).
    q3 = pltpu.einshape("mhd->hmd", q.reshape(T, n_head, hd)).astype(cd)
    k3 = pltpu.einshape("mhd->hmd", k.reshape(T, n_head, hd)).astype(cd)
    v3 = pltpu.einshape("mhd->hmd", v.reshape(T, n_head, hd)).astype(cd)

    # Leading-batch einsums: contract on the last dim -> no explicit k.T,
    # no per-head MXU drains.
    s = jnp.einsum("hqd,hkd->hqk", q3, k3,
                   preferred_element_type=jnp.float32)        # (H, T, T)
    s = s - jnp.max(s, axis=-1, keepdims=True)                # stable softmax
    p = jnp.exp(s)
    p = p * pl.reciprocal(jnp.sum(p, axis=-1, keepdims=True),
                          approx=approx_recip)                # EUP reciprocal
    a3 = jnp.einsum("hqk,hkd->hqd", p.astype(cd), v3,
                    preferred_element_type=jnp.float32)       # (H, T, hd)

    attn = pltpu.einshape("hmd->mhd", a3).reshape(T, C)       # back to (T, C)
    attn = jnp.dot(attn.astype(cd), wo_ref[...],
                   preferred_element_type=jnp.float32) + bo_ref[...]
    x = x + attn                                    # resid dropout == identity

    # ---------------- MLP branch: x + mlp(ln2(x)) ----------------
    h2 = _layernorm(x, ln2_w_ref[...], ln2_b_ref[...])
    m = jnp.dot(h2.astype(cd), w1_ref[...],
                preferred_element_type=jnp.float32) + b1_ref[...]
    m = _gelu_exact(m)
    m = jnp.dot(m.astype(cd), w2_ref[...],
                preferred_element_type=jnp.float32) + b2_ref[...]
    x = x + m                                       # dropout == identity (eval)

    o_ref[...] = x.astype(o_ref.dtype)


def full_block(x, params, n_head, *, compute_dtype=jnp.bfloat16):
    """Fused transformer-block forward.

    compute_dtype: dtype of MXU matmul operands (accumulation is always f32).
      bfloat16 (default) is the fast path on v5e/v6e/v7x and halves the
      resident weight VMEM; float32 matches the fp32 reference to ~2e-4.
    """
    B, T, C = x.shape
    approx_recip = compute_dtype != jnp.float32

    # Fuse the three projections at the wrapper level -> one (C, 3C) weight,
    # stored in the matmul compute dtype (biases / LN params stay f32).
    wqkv = jnp.concatenate([params["wq"], params["wk"], params["wv"]],
                           axis=1).astype(compute_dtype)
    bqkv = jnp.concatenate([params["bq"], params["bk"], params["bv"]], axis=1)
    wo = params["wo"].astype(compute_dtype)
    w1 = params["w1"].astype(compute_dtype)
    w2 = params["w2"].astype(compute_dtype)

    weights = [params["ln1_w"], params["ln1_b"], params["ln2_w"], params["ln2_b"],
               wqkv, bqkv, wo, params["bo"],
               w1, params["b1"], w2, params["b2"]]

    def weight_spec(shape):
        # Whole (grid-invariant) parameter resident in VMEM. Its block index is
        # constant across the B grid, so single-buffer it (no dead 2x buffer).
        return pl.BlockSpec(shape, lambda b, _s=shape: (0,) * len(_s),
                            pipeline_mode=pl.Buffered(1))

    # x / output keep default double-buffering so batch element b+1 prefetches
    # while b computes.
    in_specs = [pl.BlockSpec((None, T, C), lambda b: (b, 0, 0))]
    in_specs += [weight_spec(w.shape) for w in weights]

    # ---- advisory cost estimate (dtype-aware, includes LN params) ----
    flops = B * (24 * T * C * C + 4 * T * T * C)
    transcendentals = B * (n_head * T * T + 4 * T * C)        # exp + erf
    param_bytes = sum(int(w.size) * w.dtype.itemsize for w in weights)
    bytes_accessed = 2 * B * T * C * x.dtype.itemsize + param_bytes

    # ---- explicit VMEM budget: resident params + activation intermediates ----
    act_bytes = 4 * (6 * T * C + 3 * T * C + n_head * T * T + 4 * T * C)
    vmem_limit_bytes = int(min(96 * 1024 * 1024,
                               max(32 * 1024 * 1024,
                                   2 * param_bytes + 4 * act_bytes)))

    return pl.pallas_call(
        functools.partial(full_block_kernel, n_head=n_head,
                          compute_dtype=compute_dtype,
                          approx_recip=approx_recip),
        out_shape=jax.ShapeDtypeStruct((B, T, C), x.dtype),
        grid=(B,),                                  # one grid step per batch element
        in_specs=in_specs,
        out_specs=pl.BlockSpec((None, T, C), lambda b: (b, 0, 0)),
        compiler_params=pltpu.CompilerParams(
            dimension_semantics=("parallel",),
            vmem_limit_bytes=vmem_limit_bytes),
        cost_estimate=pl.CostEstimate(flops=flops,
                                      transcendentals=transcendentals,
                                      bytes_accessed=bytes_accessed),
    )(x, *weights)


def full_block_ref(x, params, n_head):
    """Pure-JAX reference mirroring the PyTorch forward (eval mode, fp32)."""
    B, T, C = x.shape
    hd = C // n_head

    def ln(z, w, b):
        mu = z.mean(-1, keepdims=True)
        var = ((z - mu) ** 2).mean(-1, keepdims=True)
        return (z - mu) / jnp.sqrt(var + EPS) * w + b

    h = ln(x, params["ln1_w"], params["ln1_b"])
    q = h @ params["wq"] + params["bq"]
    k = h @ params["wk"] + params["bk"]
    v = h @ params["wv"] + params["bv"]
    q = q.reshape(B, T, n_head, hd).transpose(0, 2, 1, 3)
    k = k.reshape(B, T, n_head, hd).transpose(0, 2, 1, 3)
    v = v.reshape(B, T, n_head, hd).transpose(0, 2, 1, 3)
    s = jnp.einsum("bhqd,bhkd->bhqk", q, k) / math.sqrt(hd)
    p = jax.nn.softmax(s, axis=-1)
    a = jnp.einsum("bhqk,bhkd->bhqd", p, v).transpose(0, 2, 1, 3).reshape(B, T, C)
    a = a @ params["wo"] + params["bo"]
    x = x + a

    h2 = ln(x, params["ln2_w"], params["ln2_b"])
    m = h2 @ params["w1"] + params["b1"]
    m = 0.5 * m * (1.0 + jax.lax.erf(m / math.sqrt(2.0)))
    m = m @ params["w2"] + params["b2"]
    return x + m


def make_params(key, n_embd):
    ks = jax.random.split(key, 12)
    std = 0.02
    C = n_embd
    return {
        "ln1_w": jnp.ones((1, C), jnp.float32),
        "ln1_b": jnp.zeros((1, C), jnp.float32),
        "ln2_w": jnp.ones((1, C), jnp.float32),
        "ln2_b": jnp.zeros((1, C), jnp.float32),
        "wq": std * jax.random.normal(ks[0], (C, C), jnp.float32),
        "bq": std * jax.random.normal(ks[1], (1, C), jnp.float32),
        "wk": std * jax.random.normal(ks[2], (C, C), jnp.float32),
        "bk": std * jax.random.normal(ks[3], (1, C), jnp.float32),
        "wv": std * jax.random.normal(ks[4], (C, C), jnp.float32),
        "bv": std * jax.random.normal(ks[5], (1, C), jnp.float32),
        "wo": std * jax.random.normal(ks[6], (C, C), jnp.float32),
        "bo": std * jax.random.normal(ks[7], (1, C), jnp.float32),
        "w1": std * jax.random.normal(ks[8], (C, 4 * C), jnp.float32),
        "b1": std * jax.random.normal(ks[9], (1, 4 * C), jnp.float32),
        "w2": std * jax.random.normal(ks[10], (4 * C, C), jnp.float32),
        "b2": std * jax.random.normal(ks[11], (1, C), jnp.float32),
    }


if __name__ == "__main__":
    # small config: batch=2, seq=8, n_embd=32, n_head=4
    B, T, C, H = 2, 8, 32, 4
    key = jax.random.PRNGKey(0)
    kx, kp = jax.random.split(key)
    x = jax.random.normal(kx, (B, T, C), jnp.float32)
    params = make_params(kp, C)

    ref = full_block_ref(x, params, n_head=H)

    # Optimized path: bf16 MXU operands, f32 accumulation (default).
    out_bf16 = jax.block_until_ready(full_block(x, params, n_head=H))
    assert out_bf16.shape == (B, T, C)
    err_bf16 = float(jnp.max(jnp.abs(out_bf16 - ref)))
    assert err_bf16 < 2e-2, err_bf16

    # Full-precision path: tight check against the fp32 reference.
    out_f32 = jax.block_until_ready(
        full_block(x, params, n_head=H, compute_dtype=jnp.float32))
    err_f32 = float(jnp.max(jnp.abs(out_f32 - ref)))
    assert err_f32 < 2e-4, err_f32

    print("KERNEL_OK")
</pallas_src>

<mosaic_0001>
module attributes {stable_mosaic.version = 11 : i64} {
  func.func @full_block_kernel(%arg0: i32, %arg1: memref<1x8x32xf32, #tpu.memory_space<vmem>>, %arg2: memref<1x32xf32, #tpu.memory_space<vmem>>, %arg3: memref<1x32xf32, #tpu.memory_space<vmem>>, %arg4: memref<1x32xf32, #tpu.memory_space<vmem>>, %arg5: memref<1x32xf32, #tpu.memory_space<vmem>>, %arg6: memref<32x96xbf16, #tpu.memory_space<vmem>>, %arg7: memref<1x96xf32, #tpu.memory_space<vmem>>, %arg8: memref<32x32xbf16, #tpu.memory_space<vmem>>, %arg9: memref<1x32xf32, #tpu.memory_space<vmem>>, %arg10: memref<32x128xbf16, #tpu.memory_space<vmem>>, %arg11: memref<1x128xf32, #tpu.memory_space<vmem>>, %arg12: memref<128x32xbf16, #tpu.memory_space<vmem>>, %arg13: memref<1x32xf32, #tpu.memory_space<vmem>>, %arg14: memref<1x8x32xf32, #tpu.memory_space<vmem>>) attributes {dimension_semantics = [#tpu.dimension_semantics<parallel>], iteration_bounds = array<i64: 2>, scalar_prefetch = 0 : i64, scratch_operands = 0 : i64, tpu.core_type = #tpu.core_type<tc>, window_params = [{transform_indices = @transform_0, window_bounds = array<i64: 1, 8, 32>}, {pipeline_mode = #tpu.pipeline_mode<synchronous>, transform_indices = @transform_1, window_bounds = array<i64: 1, 32>}, {pipeline_mode = #tpu.pipeline_mode<synchronous>, transform_indices = @transform_2, window_bounds = array<i64: 1, 32>}, {pipeline_mode = #tpu.pipeline_mode<synchronous>, transform_indices = @transform_3, window_bounds = array<i64: 1, 32>}, {pipeline_mode = #tpu.pipeline_mode<synchronous>, transform_indices = @transform_4, window_bounds = array<i64: 1, 32>}, {pipeline_mode = #tpu.pipeline_mode<synchronous>, transform_indices = @transform_5, window_bounds = array<i64: 32, 96>}, {pipeline_mode = #tpu.pipeline_mode<synchronous>, transform_indices = @transform_6, window_bounds = array<i64: 1, 96>}, {pipeline_mode = #tpu.pipeline_mode<synchronous>, transform_indices = @transform_7, window_bounds = array<i64: 32, 32>}, {pipeline_mode = #tpu.pipeline_mode<synchronous>, transform_indices = @transform_8, window_bounds = array<i64: 1, 32>}, {pipeline_mode = #tpu.pipeline_mode<synchronous>, transform_indices = @transform_9, window_bounds = array<i64: 32, 128>}, {pipeline_mode = #tpu.pipeline_mode<synchronous>, transform_indices = @transform_10, window_bounds = array<i64: 1, 128>}, {pipeline_mode = #tpu.pipeline_mode<synchronous>, transform_indices = @transform_11, window_bounds = array<i64: 128, 32>}, {pipeline_mode = #tpu.pipeline_mode<synchronous>, transform_indices = @transform_12, window_bounds = array<i64: 1, 32>}, {transform_indices = @transform_13, window_bounds = array<i64: 1, 8, 32>}]} {
    %c0 = arith.constant 0 : index
    %c0_0 = arith.constant 0 : index
    %c0_1 = arith.constant 0 : index
    %0 = vector.load %arg1[%c0, %c0_0, %c0_1] : memref<1x8x32xf32, #tpu.memory_space<vmem>>, vector<1x8x32xf32>
    %1 = vector.shape_cast %0 : vector<1x8x32xf32> to vector<8x32xf32>
    %c0_2 = arith.constant 0 : index
    %c0_3 = arith.constant 0 : index
    %2 = vector.load %arg2[%c0_2, %c0_3] : memref<1x32xf32, #tpu.memory_space<vmem>>, vector<1x32xf32>
    %c0_4 = arith.constant 0 : index
    %c0_5 = arith.constant 0 : index
    %3 = vector.load %arg3[%c0_4, %c0_5] : memref<1x32xf32, #tpu.memory_space<vmem>>, vector<1x32xf32>
    %cst = arith.constant dense<0.000000e+00> : vector<8xf32>
    %4 = vector.multi_reduction <add>, %1, %cst [1] : vector<8x32xf32> to vector<8xf32>
    %5 = vector.shape_cast %4 : vector<8xf32> to vector<8x1xf32>
    %cst_6 = arith.constant 3.200000e+01 : f32
    %6 = vector.broadcast %cst_6 : f32 to vector<8x1xf32>
    %7 = arith.divf %5, %6 : vector<8x1xf32>
    %8 = vector.broadcast %7 : vector<8x1xf32> to vector<8x32xf32>
    %9 = arith.subf %1, %8 : vector<8x32xf32>
    %10 = arith.mulf %9, %9 : vector<8x32xf32>
    %cst_7 = arith.constant dense<0.000000e+00> : vector<8xf32>
    %11 = vector.multi_reduction <add>, %10, %cst_7 [1] : vector<8x32xf32> to vector<8xf32>
    %12 = vector.shape_cast %11 : vector<8xf32> to vector<8x1xf32>
    %cst_8 = arith.constant 3.200000e+01 : f32
    %13 = vector.broadcast %cst_8 : f32 to vector<8x1xf32>
    %14 = arith.divf %12, %13 : vector<8x1xf32>
    %cst_9 = arith.constant 9.99999974E-6 : f32
    %15 = vector.broadcast %cst_9 : f32 to vector<8x1xf32>
    %16 = arith.addf %14, %15 : vector<8x1xf32>
    %17 = math.rsqrt %16 : vector<8x1xf32>
    %18 = vector.broadcast %17 : vector<8x1xf32> to vector<8x32xf32>
    %19 = arith.mulf %9, %18 : vector<8x32xf32>
    %20 = vector.broadcast %2 : vector<1x32xf32> to vector<8x32xf32>
    %21 = arith.mulf %19, %20 : vector<8x32xf32>
    %22 = vector.broadcast %3 : vector<1x32xf32> to vector<8x32xf32>
    %23 = arith.addf %21, %22 : vector<8x32xf32>
    %24 = arith.truncf %23 : vector<8x32xf32> to vector<8x32xbf16>
    %c0_10 = arith.constant 0 : index
    %c0_11 = arith.constant 0 : index
    %25 = vector.load %arg6[%c0_10, %c0_11] : memref<32x96xbf16, #tpu.memory_space<vmem>>, vector<32x96xbf16>
    %cst_12 = arith.constant dense<0.000000e+00> : vector<8x96xf32>
    %26 = tpu.matmul %24, %25, %cst_12 {dimension_numbers = #tpu.dot_dimension_numbers<[1], [0], [0], [1], [0, 0, 1, 1], [], []>} : vector<8x32xbf16>, vector<32x96xbf16>, vector<8x96xf32> -> vector<8x96xf32>
    %c0_13 = arith.constant 0 : index
    %c0_14 = arith.constant 0 : index
    %27 = vector.load %arg7[%c0_13, %c0_14] : memref<1x96xf32, #tpu.memory_space<vmem>>, vector<1x96xf32>
    %28 = vector.broadcast %27 : vector<1x96xf32> to vector<8x96xf32>
    %29 = arith.addf %26, %28 : vector<8x96xf32>
    %30 = vector.extract_strided_slice %29 {offsets = [0, 0], sizes = [8, 32], strides = [1, 1]} : vector<8x96xf32> to vector<8x32xf32>
    %cst_15 = arith.constant 0.353553385 : f32
    %31 = vector.broadcast %cst_15 : f32 to vector<8x32xf32>
    %32 = arith.mulf %30, %31 : vector<8x32xf32>
    %33 = vector.extract_strided_slice %29 {offsets = [0, 32], sizes = [8, 32], strides = [1, 1]} : vector<8x96xf32> to vector<8x32xf32>
    %34 = vector.extract_strided_slice %29 {offsets = [0, 64], sizes = [8, 32], strides = [1, 1]} : vector<8x96xf32> to vector<8x32xf32>
    %35 = vector.shape_cast %32 : vector<8x32xf32> to vector<8x4x8xf32>
    %36 = tpu.transpose %35, [1, 0, 2] : vector<8x4x8xf32> -> vector<4x8x8xf32>
    %37 = arith.truncf %36 : vector<4x8x8xf32> to vector<4x8x8xbf16>
    %38 = vector.shape_cast %33 : vector<8x32xf32> to vector<8x4x8xf32>
    %39 = tpu.transpose %38, [1, 0, 2] : vector<8x4x8xf32> -> vector<4x8x8xf32>
    %40 = arith.truncf %39 : vector<4x8x8xf32> to vector<4x8x8xbf16>
    %41 = vector.shape_cast %34 : vector<8x32xf32> to vector<8x4x8xf32>
    %42 = tpu.transpose %41, [1, 0, 2] : vector<8x4x8xf32> -> vector<4x8x8xf32>
    %43 = arith.truncf %42 : vector<4x8x8xf32> to vector<4x8x8xbf16>
    "tpu.trace_start"() <{level = 10 : i32, message = "hqd,hkd->hqk"}> : () -> ()
    %cst_16 = arith.constant dense<0.000000e+00> : vector<4x8x8xf32>
    %44 = tpu.matmul %37, %40, %cst_16 {dimension_numbers = #tpu.dot_dimension_numbers<[2], [2], [1], [1], [0, 0, 0, 1, 1, 1], [0], [0]>} : vector<4x8x8xbf16>, vector<4x8x8xbf16>, vector<4x8x8xf32> -> vector<4x8x8xf32>
    "tpu.trace_stop"() : () -> ()
    %cst_17 = arith.constant dense<0xFF800000> : vector<4x8xf32>
    %45 = vector.multi_reduction <maximumf>, %44, %cst_17 [2] : vector<4x8x8xf32> to vector<4x8xf32>
    %46 = vector.shape_cast %45 : vector<4x8xf32> to vector<4x8x1xf32>
    %47 = vector.broadcast %46 : vector<4x8x1xf32> to vector<4x8x8xf32>
    %48 = arith.subf %44, %47 : vector<4x8x8xf32>
    %49 = math.exp %48 : vector<4x8x8xf32>
    %cst_18 = arith.constant dense<0.000000e+00> : vector<4x8xf32>
    %50 = vector.multi_reduction <add>, %49, %cst_18 [2] : vector<4x8x8xf32> to vector<4x8xf32>
    %51 = vector.shape_cast %50 : vector<4x8xf32> to vector<4x8x1xf32>
    %52 = tpu.reciprocal %51 {approx = true} : vector<4x8x1xf32> -> vector<4x8x1xf32>
    %53 = vector.broadcast %52 : vector<4x8x1xf32> to vector<4x8x8xf32>
    %54 = arith.mulf %49, %53 : vector<4x8x8xf32>
    %55 = arith.truncf %54 : vector<4x8x8xf32> to vector<4x8x8xbf16>
    "tpu.trace_start"() <{level = 10 : i32, message = "hqk,hkd->hqd"}> : () -> ()
    %cst_19 = arith.constant dense<0.000000e+00> : vector<4x8x8xf32>
    %56 = tpu.matmul %55, %43, %cst_19 {dimension_numbers = #tpu.dot_dimension_numbers<[2], [1], [1], [2], [0, 0, 0, 1, 1, 2], [0], [0]>} : vector<4x8x8xbf16>, vector<4x8x8xbf16>, vector<4x8x8xf32> -> vector<4x8x8xf32>
    "tpu.trace_stop"() : () -> ()
    %57 = tpu.transpose %56, [1, 0, 2] : vector<4x8x8xf32> -> vector<8x4x8xf32>
    %58 = vector.shape_cast %57 : vector<8x4x8xf32> to vector<8x32xf32>
    %59 = arith.truncf %58 : vector<8x32xf32> to vector<8x32xbf16>
    %c0_20 = arith.constant 0 : index
    %c0_21 = arith.constant 0 : index
    %60 = vector.load %arg8[%c0_20, %c0_21] : memref<32x32xbf16, #tpu.memory_space<vmem>>, vector<32x32xbf16>
    %cst_22 = arith.constant dense<0.000000e+00> : vector<8x32xf32>
    %61 = tpu.matmul %59, %60, %cst_22 {dimension_numbers = #tpu.dot_dimension_numbers<[1], [0], [0], [1], [0, 0, 1, 1], [], []>} : vector<8x32xbf16>, vector<32x32xbf16>, vector<8x32xf32> -> vector<8x32xf32>
    %c0_23 = arith.constant 0 : index
    %c0_24 = arith.constant 0 : index
    %62 = vector.load %arg9[%c0_23, %c0_24] : memref<1x32xf32, #tpu.memory_space<vmem>>, vector<1x32xf32>
    %63 = vector.broadcast %62 : vector<1x32xf32> to vector<8x32xf32>
    %64 = arith.addf %61, %63 : vector<8x32xf32>
    %65 = arith.addf %1, %64 : vector<8x32xf32>
    %c0_25 = arith.constant 0 : index
    %c0_26 = arith.constant 0 : index
    %66 = vector.load %arg4[%c0_25, %c0_26] : memref<1x32xf32, #tpu.memory_space<vmem>>, vector<1x32xf32>
    %c0_27 = arith.constant 0 : index
    %c0_28 = arith.constant 0 : index
    %67 = vector.load %arg5[%c0_27, %c0_28] : memref<1x32xf32, #tpu.memory_space<vmem>>, vector<1x32xf32>
    %cst_29 = arith.constant dense<0.000000e+00> : vector<8xf32>
    %68 = vector.multi_reduction <add>, %65, %cst_29 [1] : vector<8x32xf32> to vector<8xf32>
    %69 = vector.shape_cast %68 : vector<8xf32> to vector<8x1xf32>
    %cst_30 = arith.constant 3.200000e+01 : f32
    %70 = vector.broadcast %cst_30 : f32 to vector<8x1xf32>
    %71 = arith.divf %69, %70 : vector<8x1xf32>
    %72 = vector.broadcast %71 : vector<8x1xf32> to vector<8x32xf32>
    %73 = arith.subf %65, %72 : vector<8x32xf32>
    %74 = arith.mulf %73, %73 : vector<8x32xf32>
    %cst_31 = arith.constant dense<0.000000e+00> : vector<8xf32>
    %75 = vector.multi_reduction <add>, %74, %cst_31 [1] : vector<8x32xf32> to vector<8xf32>
    %76 = vector.shape_cast %75 : vector<8xf32> to vector<8x1xf32>
    %cst_32 = arith.constant 3.200000e+01 : f32
    %77 = vector.broadcast %cst_32 : f32 to vector<8x1xf32>
    %78 = arith.divf %76, %77 : vector<8x1xf32>
    %cst_33 = arith.constant 9.99999974E-6 : f32
    %79 = vector.broadcast %cst_33 : f32 to vector<8x1xf32>
    %80 = arith.addf %78, %79 : vector<8x1xf32>
    %81 = math.rsqrt %80 : vector<8x1xf32>
    %82 = vector.broadcast %81 : vector<8x1xf32> to vector<8x32xf32>
    %83 = arith.mulf %73, %82 : vector<8x32xf32>
    %84 = vector.broadcast %66 : vector<1x32xf32> to vector<8x32xf32>
    %85 = arith.mulf %83, %84 : vector<8x32xf32>
    %86 = vector.broadcast %67 : vector<1x32xf32> to vector<8x32xf32>
    %87 = arith.addf %85, %86 : vector<8x32xf32>
    %88 = arith.truncf %87 : vector<8x32xf32> to vector<8x32xbf16>
    %c0_34 = arith.constant 0 : index
    %c0_35 = arith.constant 0 : index
    %89 = vector.load %arg10[%c0_34, %c0_35] : memref<32x128xbf16, #tpu.memory_space<vmem>>, vector<32x128xbf16>
    %cst_36 = arith.constant dense<0.000000e+00> : vector<8x128xf32>
    %90 = tpu.matmul %88, %89, %cst_36 {dimension_numbers = #tpu.dot_dimension_numbers<[1], [0], [0], [1], [0, 0, 1, 1], [], []>} : vector<8x32xbf16>, vector<32x128xbf16>, vector<8x128xf32> -> vector<8x128xf32>
    %c0_37 = arith.constant 0 : index
    %c0_38 = arith.constant 0 : index
    %91 = vector.load %arg11[%c0_37, %c0_38] : memref<1x128xf32, #tpu.memory_space<vmem>>, vector<1x128xf32>
    %92 = vector.broadcast %91 : vector<1x128xf32> to vector<8x128xf32>
    %93 = arith.addf %90, %92 : vector<8x128xf32>
    %cst_39 = arith.constant 5.000000e-01 : f32
    %94 = vector.broadcast %cst_39 : f32 to vector<8x128xf32>
    %95 = arith.mulf %94, %93 : vector<8x128xf32>
    %cst_40 = arith.constant 0.707106769 : f32
    %96 = vector.broadcast %cst_40 : f32 to vector<8x128xf32>
    %97 = arith.mulf %93, %96 : vector<8x128xf32>
    %98 = math.erf %97 : vector<8x128xf32>
    %cst_41 = arith.constant 1.000000e+00 : f32
    %99 = vector.broadcast %cst_41 : f32 to vector<8x128xf32>
    %100 = arith.addf %99, %98 : vector<8x128xf32>
    %101 = arith.mulf %95, %100 : vector<8x128xf32>
    %102 = arith.truncf %101 : vector<8x128xf32> to vector<8x128xbf16>
    %c0_42 = arith.constant 0 : index
    %c0_43 = arith.constant 0 : index
    %103 = vector.load %arg12[%c0_42, %c0_43] : memref<128x32xbf16, #tpu.memory_space<vmem>>, vector<128x32xbf16>
    %cst_44 = arith.constant dense<0.000000e+00> : vector<8x32xf32>
    %104 = tpu.matmul %102, %103, %cst_44 {dimension_numbers = #tpu.dot_dimension_numbers<[1], [0], [0], [1], [0, 0, 1, 1], [], []>} : vector<8x128xbf16>, vector<128x32xbf16>, vector<8x32xf32> -> vector<8x32xf32>
    %c0_45 = arith.constant 0 : index
    %c0_46 = arith.constant 0 : index
    %105 = vector.load %arg13[%c0_45, %c0_46] : memref<1x32xf32, #tpu.memory_space<vmem>>, vector<1x32xf32>
    %106 = vector.broadcast %105 : vector<1x32xf32> to vector<8x32xf32>
    %107 = arith.addf %104, %106 : vector<8x32xf32>
    %108 = arith.addf %65, %107 : vector<8x32xf32>
    %c0_47 = arith.constant 0 : index
    %c0_48 = arith.constant 0 : index
    %c0_49 = arith.constant 0 : index
    %109 = vector.load %arg14[%c0_47, %c0_48, %c0_49] : memref<1x8x32xf32, #tpu.memory_space<vmem>>, vector<1x8x32xf32>
    %110 = vector.shape_cast %109 : vector<1x8x32xf32> to vector<8x32xf32>
    %111 = vector.shape_cast %108 : vector<8x32xf32> to vector<1x8x32xf32>
    tpu.vector_store %arg14[%c0_47, %c0_48, %c0_49], %111 {strides = array<i32>} : memref<1x8x32xf32, #tpu.memory_space<vmem>>, vector<1x8x32xf32>,
    return
  }
  func.func @transform_0(%arg0: i32) -> (i32, i32, i32) {
    %c0_i32 = arith.constant 0 : i32
    %c0_i32_0 = arith.constant 0 : i32
    %c0_i32_1 = arith.constant 0 : i32
    return %arg0, %c0_i32, %c0_i32_0 : i32, i32, i32
  }
  func.func @transform_1(%arg0: i32) -> (i32, i32) {
    %c0_i32 = arith.constant 0 : i32
    %c0_i32_0 = arith.constant 0 : i32
    %c0_i32_1 = arith.constant 0 : i32
    return %c0_i32, %c0_i32_0 : i32, i32
  }
  func.func @transform_2(%arg0: i32) -> (i32, i32) {
    %c0_i32 = arith.constant 0 : i32
    %c0_i32_0 = arith.constant 0 : i32
    %c0_i32_1 = arith.constant 0 : i32
    return %c0_i32, %c0_i32_0 : i32, i32
  }
  func.func @transform_3(%arg0: i32) -> (i32, i32) {
    %c0_i32 = arith.constant 0 : i32
    %c0_i32_0 = arith.constant 0 : i32
    %c0_i32_1 = arith.constant 0 : i32
    return %c0_i32, %c0_i32_0 : i32, i32
  }
  func.func @transform_4(%arg0: i32) -> (i32, i32) {
    %c0_i32 = arith.constant 0 : i32
    %c0_i32_0 = arith.constant 0 : i32
    %c0_i32_1 = arith.constant 0 : i32
    return %c0_i32, %c0_i32_0 : i32, i32
  }
  func.func @transform_5(%arg0: i32) -> (i32, i32) {
    %c0_i32 = arith.constant 0 : i32
    %c0_i32_0 = arith.constant 0 : i32
    %c0_i32_1 = arith.constant 0 : i32
    return %c0_i32, %c0_i32_0 : i32, i32
  }
  func.func @transform_6(%arg0: i32) -> (i32, i32) {
    %c0_i32 = arith.constant 0 : i32
    %c0_i32_0 = arith.constant 0 : i32
    %c0_i32_1 = arith.constant 0 : i32
    return %c0_i32, %c0_i32_0 : i32, i32
  }
  func.func @transform_7(%arg0: i32) -> (i32, i32) {
    %c0_i32 = arith.constant 0 : i32
    %c0_i32_0 = arith.constant 0 : i32
    %c0_i32_1 = arith.constant 0 : i32
    return %c0_i32, %c0_i32_0 : i32, i32
  }
  func.func @transform_8(%arg0: i32) -> (i32, i32) {
    %c0_i32 = arith.constant 0 : i32
    %c0_i32_0 = arith.constant 0 : i32
    %c0_i32_1 = arith.constant 0 : i32
    return %c0_i32, %c0_i32_0 : i32, i32
  }
  func.func @transform_9(%arg0: i32) -> (i32, i32) {
    %c0_i32 = arith.constant 0 : i32
    %c0_i32_0 = arith.constant 0 : i32
    %c0_i32_1 = arith.constant 0 : i32
    return %c0_i32, %c0_i32_0 : i32, i32
  }
  func.func @transform_10(%arg0: i32) -> (i32, i32) {
    %c0_i32 = arith.constant 0 : i32
    %c0_i32_0 = arith.constant 0 : i32
    %c0_i32_1 = arith.constant 0 : i32
    return %c0_i32, %c0_i32_0 : i32, i32
  }
  func.func @transform_11(%arg0: i32) -> (i32, i32) {
    %c0_i32 = arith.constant 0 : i32
    %c0_i32_0 = arith.constant 0 : i32
    %c0_i32_1 = arith.constant 0 : i32
    return %c0_i32, %c0_i32_0 : i32, i32
  }
  func.func @transform_12(%arg0: i32) -> (i32, i32) {
    %c0_i32 = arith.constant 0 : i32
    %c0_i32_0 = arith.constant 0 : i32
    %c0_i32_1 = arith.constant 0 : i32
    return %c0_i32, %c0_i32_0 : i32, i32
  }
  func.func @transform_13(%arg0: i32) -> (i32, i32, i32) {
    %c0_i32 = arith.constant 0 : i32
    %c0_i32_0 = arith.constant 0 : i32
    %c0_i32_1 = arith.constant 0 : i32
    return %arg0, %c0_i32, %c0_i32_0 : i32, i32, i32
  }
}

</mosaic_0001>

<llo_original>
// kernel: tpu_custom_call.1
$region0: #{tpu_custom_call.1}
  #allocation0 [shape = 'u32[]', space=smem, size = 0x4, offset = 0x4, fixed_abs, tag = 'smem constant byte address 0x4 - core index']
  #allocation1 [shape = 'u32[72,128]{1,0:T(1,128)}', space=vmem, size = 0x9000, scoped, tag = 'internal scratch']
  %s0 = inlined_call_operand.vmem [shape: f32[2,8,32], index: 0, kind: input, shape index: {}]
  %s1 = inlined_call_operand.vmem [shape: f32[1,32], index: 1, kind: input, shape index: {}]
  %s2 = inlined_call_operand.vmem [shape: f32[1,32], index: 2, kind: input, shape index: {}]
  %s3 = inlined_call_operand.vmem [shape: f32[1,32], index: 3, kind: input, shape index: {}]
  %s4 = inlined_call_operand.vmem [shape: f32[1,32], index: 4, kind: input, shape index: {}]
  %s5 = inlined_call_operand.vmem [shape: bf16[32,96], index: 5, kind: input, shape index: {}]
  %s6 = inlined_call_operand.vmem [shape: f32[1,96], index: 6, kind: input, shape index: {}]
  %s7 = inlined_call_operand.vmem [shape: bf16[32,32], index: 7, kind: input, shape index: {}]
  %s8 = inlined_call_operand.vmem [shape: f32[1,32], index: 8, kind: input, shape index: {}]
  %s9 = inlined_call_operand.vmem [shape: bf16[32,128], index: 9, kind: input, shape index: {}]
  %s10 = inlined_call_operand.vmem [shape: f32[1,128], index: 10, kind: input, shape index: {}]
  %s11 = inlined_call_operand.vmem [shape: bf16[128,32], index: 11, kind: input, shape index: {}]
  %s12 = inlined_call_operand.vmem [shape: f32[1,32], index: 12, kind: input, shape index: {}]
  %s13 = inlined_call_operand.hbm [shape: f32[2,8,32], index: 13, kind: output, shape index: {}]
  %s14 = sld [smem:[#allocation0]]
  $region85: #{tpu_custom_call.1} parent=0
    _
  %s16 = ssub.s32 1, %s14
  %s17 = scalar_select 0, %s16, %s14
  $region1: #{tpu_custom_call.1} parent=0
    #allocation2 [shape = 'u8[8192]{0}', space=vmem, size = 0x2000, scoped, tag = 'output window, operand 0']
    #allocation3 [shape = 's32[2]{0}', space=sflag, size = 0x8, scoped, tag = 'scoped memory for tpu_custom_call.1']
    %18 = vsyncpa [#allocation3], 0
    %s19 = scalar_lea.sflag [#allocation3], 1
    %20 = vsyncpa %s19, 0
    loop: start=0, step=1, limit=4
    $region2: #{tpu_custom_call.1} parent=1 // loop_pre_header
      _
    $region3: #{tpu_custom_call.1} parent=1 // loop_header
      %s22 = sphi 0, %s26
      %p23 = scmp.ge.s32.totalorder %s22, 4
      %s32 = sphi 0, %s34
      %s35 = sphi 0, %s32
      %s36 = sphi 0, %s35
      %s52 = sphi 0, %s36
      %s56 = sphi 0, %s56
      %s58 = sphi 0, %s56
      %s59 = sphi 0, %s58
      %s73 = sphi 0, %s59
      %s77 = sphi 0, %s77
      %s79 = sphi 0, %s77
      %s80 = sphi 0, %s79
      %s94 = sphi 0, %s80
      %s98 = sphi 0, %s98
      %s100 = sphi 0, %s98
      %s101 = sphi 0, %s100
      %s115 = sphi 0, %s101
      %s119 = sphi 0, %s119
      %s121 = sphi 0, %s119
      %s122 = sphi 0, %s121
      %s136 = sphi 0, %s122
      %s140 = sphi 0, %s140
      %s142 = sphi 0, %s140
      %s143 = sphi 0, %s142
      %s157 = sphi 0, %s143
      %s161 = sphi 0, %s161
      %s163 = sphi 0, %s161
      %s164 = sphi 0, %s163
      %s178 = sphi 0, %s164
      %s182 = sphi 0, %s182
      %s184 = sphi 0, %s182
      %s185 = sphi 0, %s184
      %s199 = sphi 0, %s185
      %s203 = sphi 0, %s203
      %s205 = sphi 0, %s203
      %s206 = sphi 0, %s205
      %s220 = sphi 0, %s206
      %s224 = sphi 0, %s224
      %s226 = sphi 0, %s224
      %s227 = sphi 0, %s226
      %s241 = sphi 0, %s227
      %s245 = sphi 0, %s245
      %s247 = sphi 0, %s245
      %s248 = sphi 0, %s247
      %s262 = sphi 0, %s248
      %s266 = sphi 0, %s266
      %s268 = sphi 0, %s266
      %s269 = sphi 0, %s268
      %s283 = sphi 0, %s269
      %s287 = sphi 0, %s287
      %s289 = sphi 0, %s287
      %s290 = sphi 0, %s289
      %s304 = sphi 0, %s290
      %s310 = sphi 0, %s312
      %s313 = sphi 0, %s310
      %s314 = sphi 0, %s313
      %s330 = sphi 0, %s314
    $region4: #{tpu_custom_call.1} parent=1 // loop_header_branch
      %25 = sbr.rel (%p23) target = $region8
    $region5: #{tpu_custom_call.1} parent=1 // loop_body
      %s27 = ssub.s32 %s22, 1
      %s28 = ssub.s32 %s22, 2
      %s29 = sadd.s32 %s22, 1
      %s30 = ssub.s32 %s22, %s29
      %p31 = scmp.eq.s32.totalorder %s30, 0
      %s33 = sadd.s32 %s32, 1
      %s34 = scalar_select %p31, %s32, %s33
      %p37 = pneg %p31
      %p38 = scmp.eq.s32.totalorder %s22, 1
      %p39 = por %p37, %p38
      %p40 = scmp.ne.s32.totalorder %s32, %s35
      %p41 = scmp.eq.s32.totalorder %s22, 0
      %p42 = por %p40, %p41
      %p43 = scmp.ne.s32.totalorder %s32, %s35
      %p44 = scmp.eq.s32.totalorder %s27, 1
      %p45 = por %p43, %p44
      %p46 = scmp.ne.s32.totalorder %s35, %s36
      %p47 = scmp.eq.s32.totalorder %s27, 0
      %p48 = por %p46, %p47
      %p49 = scmp.ne.s32.totalorder %s35, %s36
      %p50 = scmp.eq.s32.totalorder %s28, 1
      %p51 = por %p49, %p50
      %p53 = scmp.ne.s32.totalorder %s36, %s52
      %p54 = scmp.eq.s32.totalorder %s28, 0
      %p55 = por %p53, %p54
      %s57 = sadd.s32 %s56, 1
      %p60 = scmp.eq.s32.totalorder %s22, 1
      %p61 = scmp.ne.s32.totalorder %s56, %s58
      %p62 = scmp.eq.s32.totalorder %s22, 0
      %p63 = por %p61, %p62
      %p64 = scmp.ne.s32.totalorder %s56, %s58
      %p65 = scmp.eq.s32.totalorder %s27, 1
      %p66 = por %p64, %p65
      %p67 = scmp.ne.s32.totalorder %s58, %s59
      %p68 = scmp.eq.s32.totalorder %s27, 0
      %p69 = por %p67, %p68
      %p70 = scmp.ne.s32.totalorder %s58, %s59
      %p71 = scmp.eq.s32.totalorder %s28, 1
      %p72 = por %p70, %p71
      %p74 = scmp.ne.s32.totalorder %s59, %s73
      %p75 = scmp.eq.s32.totalorder %s28, 0
      %p76 = por %p74, %p75
      %s78 = sadd.s32 %s77, 1
      %p81 = scmp.eq.s32.totalorder %s22, 1
      %p82 = scmp.ne.s32.totalorder %s77, %s79
      %p83 = scmp.eq.s32.totalorder %s22, 0
      %p84 = por %p82, %p83
      %p85 = scmp.ne.s32.totalorder %s77, %s79
      %p86 = scmp.eq.s32.totalorder %s27, 1
      %p87 = por %p85, %p86
      %p88 = scmp.ne.s32.totalorder %s79, %s80
      %p89 = scmp.eq.s32.totalorder %s27, 0
      %p90 = por %p88, %p89
      %p91 = scmp.ne.s32.totalorder %s79, %s80
      %p92 = scmp.eq.s32.totalorder %s28, 1
      %p93 = por %p91, %p92
      %p95 = scmp.ne.s32.totalorder %s80, %s94
      %p96 = scmp.eq.s32.totalorder %s28, 0
      %p97 = por %p95, %p96
      %s99 = sadd.s32 %s98, 1
      %p102 = scmp.eq.s32.totalorder %s22, 1
      %p103 = scmp.ne.s32.totalorder %s98, %s100
      %p104 = scmp.eq.s32.totalorder %s22, 0
      %p105 = por %p103, %p104
      %p106 = scmp.ne.s32.totalorder %s98, %s100
      %p107 = scmp.eq.s32.totalorder %s27, 1
      %p108 = por %p106, %p107
      %p109 = scmp.ne.s32.totalorder %s100, %s101
      %p110 = scmp.eq.s32.totalorder %s27, 0
      %p111 = por %p109, %p110
      %p112 = scmp.ne.s32.totalorder %s100, %s101
      %p113 = scmp.eq.s32.totalorder %s28, 1
      %p114 = por %p112, %p113
      %p116 = scmp.ne.s32.totalorder %s101, %s115
      %p117 = scmp.eq.s32.totalorder %s28, 0
      %p118 = por %p116, %p117
      %s120 = sadd.s32 %s119, 1
      %p123 = scmp.eq.s32.totalorder %s22, 1
      %p124 = scmp.ne.s32.totalorder %s119, %s121
      %p125 = scmp.eq.s32.totalorder %s22, 0
      %p126 = por %p124, %p125
      %p127 = scmp.ne.s32.totalorder %s119, %s121
      %p128 = scmp.eq.s32.totalorder %s27, 1
      %p129 = por %p127, %p128
      %p130 = scmp.ne.s32.totalorder %s121, %s122
      %p131 = scmp.eq.s32.totalorder %s27, 0
      %p132 = por %p130, %p131
      %p133 = scmp.ne.s32.totalorder %s121, %s122
      %p134 = scmp.eq.s32.totalorder %s28, 1
      %p135 = por %p133, %p134
      %p137 = scmp.ne.s32.totalorder %s122, %s136
      %p138 = scmp.eq.s32.totalorder %s28, 0
      %p139 = por %p137, %p138
      %s141 = sadd.s32 %s140, 1
      %p144 = scmp.eq.s32.totalorder %s22, 1
      %p145 = scmp.ne.s32.totalorder %s140, %s142
      %p146 = scmp.eq.s32.totalorder %s22, 0
      %p147 = por %p145, %p146
      %p148 = scmp.ne.s32.totalorder %s140, %s142
      %p149 = scmp.eq.s32.totalorder %s27, 1
      %p150 = por %p148, %p149
      %p151 = scmp.ne.s32.totalorder %s142, %s143
      %p152 = scmp.eq.s32.totalorder %s27, 0
      %p153 = por %p151, %p152
      %p154 = scmp.ne.s32.totalorder %s142, %s143
      %p155 = scmp.eq.s32.totalorder %s28, 1
      %p156 = por %p154, %p155
      %p158 = scmp.ne.s32.totalorder %s143, %s157
      %p159 = scmp.eq.s32.totalorder %s28, 0
      %p160 = por %p158, %p159
      %s162 = sadd.s32 %s161, 1
      %p165 = scmp.eq.s32.totalorder %s22, 1
      %p166 = scmp.ne.s32.totalorder %s161, %s163
      %p167 = scmp.eq.s32.totalorder %s22, 0
      %p168 = por %p166, %p167
      %p169 = scmp.ne.s32.totalorder %s161, %s163
      %p170 = scmp.eq.s32.totalorder %s27, 1
      %p171 = por %p169, %p170
      %p172 = scmp.ne.s32.totalorder %s163, %s164
      %p173 = scmp.eq.s32.totalorder %s27, 0
      %p174 = por %p172, %p173
      %p175 = scmp.ne.s32.totalorder %s163, %s164
      %p176 = scmp.eq.s32.totalorder %s28, 1
      %p177 = por %p175, %p176
      %p179 = scmp.ne.s32.totalorder %s164, %s178
      %p180 = scmp.eq.s32.totalorder %s28, 0
      %p181 = por %p179, %p180
      %s183 = sadd.s32 %s182, 1
      %p186 = scmp.eq.s32.totalorder %s22, 1
      %p187 = scmp.ne.s32.totalorder %s182, %s184
      %p188 = scmp.eq.s32.totalorder %s22, 0
      %p189 = por %p187, %p188
      %p190 = scmp.ne.s32.totalorder %s182, %s184
      %p191 = scmp.eq.s32.totalorder %s27, 1
      %p192 = por %p190, %p191
      %p193 = scmp.ne.s32.totalorder %s184, %s185
      %p194 = scmp.eq.s32.totalorder %s27, 0
      %p195 = por %p193, %p194
      %p196 = scmp.ne.s32.totalorder %s184, %s185
      %p197 = scmp.eq.s32.totalorder %s28, 1
      %p198 = por %p196, %p197
      %p200 = scmp.ne.s32.totalorder %s185, %s199
      %p201 = scmp.eq.s32.totalorder %s28, 0
      %p202 = por %p200, %p201
      %s204 = sadd.s32 %s203, 1
      %p207 = scmp.eq.s32.totalorder %s22, 1
      %p208 = scmp.ne.s32.totalorder %s203, %s205
      %p209 = scmp.eq.s32.totalorder %s22, 0
      %p210 = por %p208, %p209
      %p211 = scmp.ne.s32.totalorder %s203, %s205
      %p212 = scmp.eq.s32.totalorder %s27, 1
      %p213 = por %p211, %p212
      %p214 = scmp.ne.s32.totalorder %s205, %s206
      %p215 = scmp.eq.s32.totalorder %s27, 0
      %p216 = por %p214, %p215
      %p217 = scmp.ne.s32.totalorder %s205, %s206
      %p218 = scmp.eq.s32.totalorder %s28, 1
      %p219 = por %p217, %p218
      %p221 = scmp.ne.s32.totalorder %s206, %s220
      %p222 = scmp.eq.s32.totalorder %s28, 0
      %p223 = por %p221, %p222
      %s225 = sadd.s32 %s224, 1
      %p228 = scmp.eq.s32.totalorder %s22, 1
      %p229 = scmp.ne.s32.totalorder %s224, %s226
      %p230 = scmp.eq.s32.totalorder %s22, 0
      %p231 = por %p229, %p230
      %p232 = scmp.ne.s32.totalorder %s224, %s226
      %p233 = scmp.eq.s32.totalorder %s27, 1
      %p234 = por %p232, %p233
      %p235 = scmp.ne.s32.totalorder %s226, %s227
      %p236 = scmp.eq.s32.totalorder %s27, 0
      %p237 = por %p235, %p236
      %p238 = scmp.ne.s32.totalorder %s226, %s227
      %p239 = scmp.eq.s32.totalorder %s28, 1
      %p240 = por %p238, %p239
      %p242 = scmp.ne.s32.totalorder %s227, %s241
      %p243 = scmp.eq.s32.totalorder %s28, 0
      %p244 = por %p242, %p243
      %s246 = sadd.s32 %s245, 1
      %p249 = scmp.eq.s32.totalorder %s22, 1
      %p250 = scmp.ne.s32.totalorder %s245, %s247
      %p251 = scmp.eq.s32.totalorder %s22, 0
      %p252 = por %p250, %p251
      %p253 = scmp.ne.s32.totalorder %s245, %s247
      %p254 = scmp.eq.s32.totalorder %s27, 1
      %p255 = por %p253, %p254
      %p256 = scmp.ne.s32.totalorder %s247, %s248
      %p257 = scmp.eq.s32.totalorder %s27, 0
      %p258 = por %p256, %p257
      %p259 = scmp.ne.s32.totalorder %s247, %s248
      %p260 = scmp.eq.s32.totalorder %s28, 1
      %p261 = por %p259, %p260
      %p263 = scmp.ne.s32.totalorder %s248, %s262
      %p264 = scmp.eq.s32.totalorder %s28, 0
      %p265 = por %p263, %p264
      %s267 = sadd.s32 %s266, 1
      %p270 = scmp.eq.s32.totalorder %s22, 1
      %p271 = scmp.ne.s32.totalorder %s266, %s268
      %p272 = scmp.eq.s32.totalorder %s22, 0
      %p273 = por %p271, %p272
      %p274 = scmp.ne.s32.totalorder %s266, %s268
      %p275 = scmp.eq.s32.totalorder %s27, 1
      %p276 = por %p274, %p275
      %p277 = scmp.ne.s32.totalorder %s268, %s269
      %p278 = scmp.eq.s32.totalorder %s27, 0
      %p279 = por %p277, %p278
      %p280 = scmp.ne.s32.totalorder %s268, %s269
      %p281 = scmp.eq.s32.totalorder %s28, 1
      %p282 = por %p280, %p281
      %p284 = scmp.ne.s32.totalorder %s269, %s283
      %p285 = scmp.eq.s32.totalorder %s28, 0
      %p286 = por %p284, %p285
      %s288 = sadd.s32 %s287, 1
      %p291 = scmp.eq.s32.totalorder %s22, 1
      %p292 = scmp.ne.s32.totalorder %s287, %s289
      %p293 = scmp.eq.s32.totalorder %s22, 0
      %p294 = por %p292, %p293
      %p295 = scmp.ne.s32.totalorder %s287, %s289
      %p296 = scmp.eq.s32.totalorder %s27, 1
      %p297 = por %p295, %p296
      %p298 = scmp.ne.s32.totalorder %s289, %s290
      %p299 = scmp.eq.s32.totalorder %s27, 0
      %p300 = por %p298, %p299
      %p301 = scmp.ne.s32.totalorder %s289, %s290
      %p302 = scmp.eq.s32.totalorder %s28, 1
      %p303 = por %p301, %p302
      %p305 = scmp.ne.s32.totalorder %s290, %s304
      %p306 = scmp.eq.s32.totalorder %s28, 0
      %p307 = por %p305, %p306
      %s308 = ssub.s32 %s22, %s29
      %p309 = scmp.eq.s32.totalorder %s308, 0
      %s311 = sadd.s32 %s310, 1
      %s312 = scalar_select %p309, %s310, %s311
      %p315 = pneg %p309
      %p316 = scmp.eq.s32.totalorder %s22, 1
      %p317 = por %p315, %p316
      %p318 = scmp.ne.s32.totalorder %s310, %s313
      %p319 = scmp.eq.s32.totalorder %s22, 0
      %p320 = por %p318, %p319
      %p321 = scmp.ne.s32.totalorder %s310, %s313
      %p322 = scmp.eq.s32.totalorder %s27, 1
      %p323 = por %p321, %p322
      %p324 = scmp.ne.s32.totalorder %s313, %s314
      %p325 = scmp.eq.s32.totalorder %s27, 0
      %p326 = por %p324, %p325
      %p327 = scmp.ne.s32.totalorder %s313, %s314
      %p328 = scmp.eq.s32.totalorder %s28, 1
      %p329 = por %p327, %p328
      %p331 = scmp.ne.s32.totalorder %s314, %s330
      %p332 = scmp.eq.s32.totalorder %s28, 0
      %p333 = por %p331, %p332
      %p334 = scmp.le.s32.totalorder 1, %s22
      %p335 = scmp.lt.s32.totalorder %s22, 3
      %p336 = pnand %p334, %p335
      %p337 = pneg %p336
      // Predicated region
      $region9: #{tpu_custom_call.1} parent=5 // pred_check
        _
      $region10: #{tpu_custom_call.1} parent=5 // pred_check_branch
        %339 = sbr.rel (%p336) target = $region12
      $region11: #{tpu_custom_call.1} parent=5 // pred_region
        %s340 = ssub.s32 %s22, 1
        // Predicated region
        $region13: #{tpu_custom_call.1} parent=11 // pred_check
          %p341 = pneg %p69
        $region14: #{tpu_custom_call.1} parent=11 // pred_check_branch
          %343 = sbr.rel (%p341) target = $region16
        $region15: #{tpu_custom_call.1} parent=11 // pred_region
          _
        $region16: #{tpu_custom_call.1} parent=11 // pred_fallthru
          _
        // Predicated region
        $region17: #{tpu_custom_call.1} parent=11 // pred_check
          %p344 = pneg %p90
        $region18: #{tpu_custom_call.1} parent=11 // pred_check_branch
          %346 = sbr.rel (%p344) target = $region20
        $region19: #{tpu_custom_call.1} parent=11 // pred_region
          _
        $region20: #{tpu_custom_call.1} parent=11 // pred_fallthru
          _
        // Predicated region
        $region21: #{tpu_custom_call.1} parent=11 // pred_check
          %p347 = pneg %p111
        $region22: #{tpu_custom_call.1} parent=11 // pred_check_branch
          %349 = sbr.rel (%p347) target = $region24
        $region23: #{tpu_custom_call.1} parent=11 // pred_region
          _
        $region24: #{tpu_custom_call.1} parent=11 // pred_fallthru
          _
        // Predicated region
        $region25: #{tpu_custom_call.1} parent=11 // pred_check
          %p350 = pneg %p132
        $region26: #{tpu_custom_call.1} parent=11 // pred_check_branch
          %352 = sbr.rel (%p350) target = $region28
        $region27: #{tpu_custom_call.1} parent=11 // pred_region
          _
        $region28: #{tpu_custom_call.1} parent=11 // pred_fallthru
          _
        // Predicated region
        $region29: #{tpu_custom_call.1} parent=11 // pred_check
          %p353 = pneg %p153
        $region30: #{tpu_custom_call.1} parent=11 // pred_check_branch
          %355 = sbr.rel (%p353) target = $region32
        $region31: #{tpu_custom_call.1} parent=11 // pred_region
          _
        $region32: #{tpu_custom_call.1} parent=11 // pred_fallthru
          _
        // Predicated region
        $region33: #{tpu_custom_call.1} parent=11 // pred_check
          %p356 = pneg %p174
        $region34: #{tpu_custom_call.1} parent=11 // pred_check_branch
          %358 = sbr.rel (%p356) target = $region36
        $region35: #{tpu_custom_call.1} parent=11 // pred_region
          _
        $region36: #{tpu_custom_call.1} parent=11 // pred_fallthru
          _
        // Predicated region
        $region37: #{tpu_custom_call.1} parent=11 // pred_check
          %p359 = pneg %p195
        $region38: #{tpu_custom_call.1} parent=11 // pred_check_branch
          %361 = sbr.rel (%p359) target = $region40
        $region39: #{tpu_custom_call.1} parent=11 // pred_region
          _
        $region40: #{tpu_custom_call.1} parent=11 // pred_fallthru
          _
        // Predicated region
        $region41: #{tpu_custom_call.1} parent=11 // pred_check
          %p362 = pneg %p216
        $region42: #{tpu_custom_call.1} parent=11 // pred_check_branch
          %364 = sbr.rel (%p362) target = $region44
        $region43: #{tpu_custom_call.1} parent=11 // pred_region
          _
        $region44: #{tpu_custom_call.1} parent=11 // pred_fallthru
          _
        // Predicated region
        $region45: #{tpu_custom_call.1} parent=11 // pred_check
          %p365 = pneg %p237
        $region46: #{tpu_custom_call.1} parent=11 // pred_check_branch
          %367 = sbr.rel (%p365) target = $region48
        $region47: #{tpu_custom_call.1} parent=11 // pred_region
          _
        $region48: #{tpu_custom_call.1} parent=11 // pred_fallthru
          _
        // Predicated region
        $region49: #{tpu_custom_call.1} parent=11 // pred_check
          %p368 = pneg %p258
        $region50: #{tpu_custom_call.1} parent=11 // pred_check_branch
          %370 = sbr.rel (%p368) target = $region52
        $region51: #{tpu_custom_call.1} parent=11 // pred_region
          _
        $region52: #{tpu_custom_call.1} parent=11 // pred_fallthru
          _
        // Predicated region
        $region53: #{tpu_custom_call.1} parent=11 // pred_check
          %p371 = pneg %p279
        $region54: #{tpu_custom_call.1} parent=11 // pred_check_branch
          %373 = sbr.rel (%p371) target = $region56
        $region55: #{tpu_custom_call.1} parent=11 // pred_region
          _
        $region56: #{tpu_custom_call.1} parent=11 // pred_fallthru
          _
        // Predicated region
        $region57: #{tpu_custom_call.1} parent=11 // pred_check
          %p374 = pneg %p300
        $region58: #{tpu_custom_call.1} parent=11 // pred_check_branch
          %376 = sbr.rel (%p374) target = $region60
        $region59: #{tpu_custom_call.1} parent=11 // pred_region
          _
        $region60: #{tpu_custom_call.1} parent=11 // pred_fallthru
          _
      $region12: #{tpu_custom_call.1} parent=5 // pred_fallthru
        _
      %p377 = scmp.lt.s32.totalorder %s22, 2
      // Predicated region
      $region61: #{tpu_custom_call.1} parent=5 // pred_check
        %p378 = pneg %p377
      $region62: #{tpu_custom_call.1} parent=5 // pred_check_branch
        %380 = sbr.rel (%p378) target = $region64
      $region63: #{tpu_custom_call.1} parent=5 // pred_region
        // Predicated region
        $region65: #{tpu_custom_call.1} parent=63 // pred_check
          %p381 = pneg %p42
        $region66: #{tpu_custom_call.1} parent=63 // pred_check_branch
          %383 = sbr.rel (%p381) target = $region68
        $region67: #{tpu_custom_call.1} parent=63 // pred_region
          %p384 = scmp.lt.s32.totalorder %s22, 1
          %s385 = scalar_select %p384, %s22, 1
          %s386 = smul.addr %s385, 8
          %s387 = scalar_lea.vmem %s0, %s386
        $region68: #{tpu_custom_call.1} parent=63 // pred_fallthru
          _
      $region64: #{tpu_custom_call.1} parent=5 // pred_fallthru
        _
      %p388 = scmp.le.s32.totalorder 1, %s22
      %p389 = scmp.lt.s32.totalorder %s22, 3
      %p390 = pnand %p388, %p389
      %p391 = pneg %p390
      // Predicated region
      $region69: #{tpu_custom_call.1} parent=5 // pred_check
        _
      $region70: #{tpu_custom_call.1} parent=5 // pred_check_branch
        %393 = sbr.rel (%p390) target = $region72
      $region71: #{tpu_custom_call.1} parent=5 // pred_region
        %s394 = ssub.s32 %s22, 1
        %p395 = scmp.lt.s32.totalorder %s27, 1
        %s396 = scalar_select %p395, %s27, 1
        %s397 = smul.addr %s396, 8
        %s398 = scalar_lea.vmem %s0, %s397
        %p399 = pneg %p48
        %p400 = pneg %p45
        %p401 = pneg %p69
        %p402 = pneg %p66
        %p403 = pneg %p90
        %p404 = pneg %p87
        %p405 = pneg %p111
        %p406 = pneg %p108
        %p407 = pneg %p132
        %p408 = pneg %p129
        %p409 = pneg %p153
        %p410 = pneg %p150
        %p411 = pneg %p174
        %p412 = pneg %p171
        %p413 = pneg %p195
        %p414 = pneg %p192
        %p415 = pneg %p216
        %p416 = pneg %p213
        %p417 = pneg %p237
        %p418 = pneg %p234
        %p419 = pneg %p258
        %p420 = pneg %p255
        %p421 = pneg %p279
        %p422 = pneg %p276
        %p423 = pneg %p300
        %p424 = pneg %p297
        %p425 = pneg %p326
        %p426 = pneg %p323
        %s427 = sand.u32 %s313, 1
        %s428 = scalar_lea.sflag [#allocation3], %s427
        %s429 = sand.u32 %s313, 1
        %s430 = smul.addr %s429, 8
        %s431 = scalar_lea.vmem [#allocation2], %s430
        %p432 = scmp.lt.s32.totalorder %s27, 1
        %s433 = scalar_select %p432, %s27, 1
        %s434 = smul.addr %s433, 8
        %s435 = scalar_lea.vmem %s0, %s434
        %v437 = vld [vmem:[%s435] sm:$0xff]
        %v438 = vld [vmem:[%s1] sm:$0x1]
        %v439 = vld [vmem:[%s2] sm:$0x1]
        %vm440 = vcmask 261120
        %v441 = vsel %vm440, %v437, 0.0
        %442 = vadd.xlane.f32.xlu0 %v441
        %v443 = vpop.xlane.xlu0 %442
        %v444 = vrcp.pop 32.0
        %v445 = vmul.f32 32.0, %v444
        %v446 = vsub.f32 1.0, %v445
        %v447 = vmul.f32 %v444, %v446
        %v448 = vadd.f32 %v444, %v447
        %vm449 = vweird.f32 %v444
        %v450 = vsel %vm449, %v444, %v448
        %v451 = vmul.f32 %v443, %v450
        %v452 = vsub.f32 %v437, %v451
        %v453 = vmul.f32 %v452, %v452
        %v454 = vsel %vm440, %v453, 0.0
        %455 = vadd.xlane.f32.xlu0 %v454
        %v456 = vpop.xlane.xlu0 %455
        %v457 = vmul.f32 %v456, %v450
        %v458 = vadd.f32 %v457, 1e-05
        %v459 = vrsqrt.pop %v458
        %v460 = vmul.f32 %v459, %v458
        %v461 = vmul.f32 %v460, %v459
        %v462 = vmul.f32 0.5, %v461
        %v463 = vsub.f32 1.5, %v462
        %v464 = vmul.f32 %v459, %v463
        %vm465 = vweird.f32 %v458
        %vm466 = vweird.f32 %v459
        %vm467 = vmor %vm465, %vm466
        %v468 = vsel %vm467, %v459, %v464
        %v469 = vmul.f32 %v452, %v468
        %v471 = vperm.slane %v438, 0
        %v473 = vmul.f32 %v469, %v471
        %v475 = vperm.slane %v439, 0
        %v477 = vadd.f32 %v473, %v475
        %v478 = vpack.c.bf16 %v477, %v477
        %v479 = vld [vmem:[%s5] sm:$0xf]
        %v480 = vld [vmem:[%s5 + $0x4] sm:$0xf]
        %v481 = vld [vmem:[%s5 + $0x8] sm:$0xf]
        %v482 = vld [vmem:[%s5 + $0xc] sm:$0xf]
        %v483 = vld [vmem:[%s6] sm:$0x1]
        %v485 = vperm.slane %v483, 0
        %v491 = vunpack.c.l.b16 %v479
        %v492 = vunpack.c.l.b16 %v480
        %v493 = vunpack.c.l.b16 %v481
        %v494 = vunpack.c.l.b16 %v482
        %v495 = vpack.c.b16 %v492, %v491
        %v496 = vpack.c.b16 %v494, %v493
        %v500 = vsel %vm440, %v478, 0
        %502 = vmatpush.bf16.msra.mxu0 0
        %503 = vmatpush.bf16.msra.mxu0 0
        %504 = vmatpush.bf16.msra.mxu0 0
        %505 = vmatpush.bf16.msra.mxu0 0
        %506 = vmatpush.bf16.msra.mxu0 0
        %507 = vmatpush.bf16.msra.mxu0 0
        %508 = vmatpush.bf16.msra.mxu0 %v496
        %509 = vmatpush.bf16.msra.mxu0 %v495
        %510 = vmatmul.bf16.gmra.mxu0 %v500
        %v511 = vpop.f32.mrf.mxu0
        %v512 = vadd.f32 %v485, %v511
        %v513 = vpop.f32.mrf.mxu0
        %514 = vdwg.mxu0
        %v515 = vmul.f32 %v512, 0.35355338
        %517 = vrot.lane.b32.xlu0 %v515, 120
        %v518 = vpop.permute.xlu0 %517
        %520 = vrot.lane.b32.xlu0 %v515, 112
        %v521 = vpop.permute.xlu0 %520
        %523 = vrot.lane.b32.xlu0 %v515, 104
        %v524 = vpop.permute.xlu0 %523
        %v526 = vrot.slane %v521, 4
        %vm527 = vcmask 1047556
        %v528 = vsel %vm527, %v526, %v515
        %v529 = vrot.slane %v515, 4
        %v530 = vsel %vm527, %v521, %v529
        %v532 = vunpack.c.l.s4 1983009808
        %v533 = vunpack.c.0.s8 %v532
        %v534 = vperm.slane %v528, %v533
        %v536 = vunpack.c.l.s4 1983009808
        %v537 = vunpack.c.0.s8 %v536
        %v538 = vperm.slane %v530, %v537
        %v539 = vrot.slane %v524, 4
        %v540 = vsel %vm527, %v539, %v518
        %v541 = vrot.slane %v518, 4
        %v542 = vsel %vm527, %v524, %v541
        %v544 = vunpack.c.l.s4 1983009808
        %v545 = vunpack.c.0.s8 %v544
        %v546 = vperm.slane %v540, %v545
        %v548 = vunpack.c.l.s4 1983009808
        %v549 = vunpack.c.0.s8 %v548
        %v550 = vperm.slane %v542, %v549
        %v551 = vrot.slane %v546, 4
        %v552 = vsel %vm527, %v551, %v534
        %v553 = vrot.slane %v534, 4
        %v554 = vsel %vm527, %v546, %v553
        %v556 = vunpack.c.l.s4 1934713408
        %v557 = vunpack.c.0.s8 %v556
        %v558 = vperm.slane %v552, %v557
        %v560 = vunpack.c.l.s4 1934713408
        %v561 = vunpack.c.0.s8 %v560
        %v562 = vperm.slane %v554, %v561
        %v563 = vrot.slane %v550, 4
        %v564 = vsel %vm527, %v563, %v538
        %v565 = vrot.slane %v538, 4
        %v566 = vsel %vm527, %v550, %v565
        %v568 = vunpack.c.l.s4 1934713408
        %v569 = vunpack.c.0.s8 %v568
        %v570 = vperm.slane %v564, %v569
        %v572 = vunpack.c.l.s4 1934713408
        %v573 = vunpack.c.0.s8 %v572
        %v574 = vperm.slane %v566, %v573
        %v575 = vrot.slane %v558, 4
        %v576 = vsel %vm527, 0.0, %v575
        %v577 = vrot.slane %v562, 4
        %v578 = vsel %vm527, 0.0, %v577
        %v579 = vrot.slane %v570, 4
        %v580 = vsel %vm527, 0.0, %v579
        %v581 = vrot.slane %v574, 4
        %v582 = vsel %vm527, 0.0, %v581
        %v583 = vsel %vm527, %v577, %v558
        %v585 = vunpack.c.l.s4 1983009808
        %v586 = vunpack.c.0.s8 %v585
        %v587 = vperm.slane %v583, %v586
        %v588 = vrot.slane %v578, 4
        %v589 = vsel %vm527, %v588, %v576
        %v591 = vunpack.c.l.s4 1983009808
        %v592 = vunpack.c.0.s8 %v591
        %v593 = vperm.slane %v589, %v592
        %v594 = vsel %vm527, %v581, %v570
        %v596 = vunpack.c.l.s4 1983009808
        %v597 = vunpack.c.0.s8 %v596
        %v598 = vperm.slane %v594, %v597
        %v599 = vrot.slane %v582, 4
        %v600 = vsel %vm527, %v599, %v580
        %v602 = vunpack.c.l.s4 1983009808
        %v603 = vunpack.c.0.s8 %v602
        %v604 = vperm.slane %v600, %v603
        %v605 = vrot.slane %v593, 4
        %v606 = vsel %vm527, %v605, %v587
        %v607 = vrot.slane %v587, 4
        %v608 = vsel %vm527, %v593, %v607
        %v610 = vunpack.c.l.s4 1934713408
        %v611 = vunpack.c.0.s8 %v610
        %v612 = vperm.slane %v606, %v611
        %v614 = vunpack.c.l.s4 1934713408
        %v615 = vunpack.c.0.s8 %v614
        %v616 = vperm.slane %v608, %v615
        %v617 = vrot.slane %v604, 4
        %v618 = vsel %vm527, %v617, %v598
        %v619 = vrot.slane %v598, 4
        %v620 = vsel %vm527, %v604, %v619
        %v622 = vunpack.c.l.s4 1934713408
        %v623 = vunpack.c.0.s8 %v622
        %v624 = vperm.slane %v618, %v623
        %v626 = vunpack.c.l.s4 1934713408
        %v627 = vunpack.c.0.s8 %v626
        %v628 = vperm.slane %v620, %v627
        %v629 = vrot.slane %v624, 4
        %v630 = vsel %vm527, %v629, %v612
        %v631 = vrot.slane %v612, 4
        %v632 = vsel %vm527, %v624, %v631
        %v633 = vrot.slane %v628, 4
        %v634 = vsel %vm527, %v633, %v616
        %v635 = vrot.slane %v616, 4
        %v636 = vsel %vm527, %v628, %v635
        %v637 = vpack.c.bf16 %v630, %v630
        %v638 = vpack.c.bf16 %v632, %v632
        %v639 = vpack.c.bf16 %v634, %v634
        %v640 = vpack.c.bf16 %v636, %v636
        %642 = vrot.lane.b32.xlu0 %v512, 120
        %v643 = vpop.permute.xlu0 %642
        %644 = vrot.lane.b32.xlu0 %v512, 112
        %v645 = vpop.permute.xlu0 %644
        %646 = vrot.lane.b32.xlu0 %v512, 104
        %v647 = vpop.permute.xlu0 %646
        %648 = vrot.lane.b32.xlu0 %v512, 96
        %v649 = vpop.permute.xlu0 %648
        %650 = vrot.lane.b32.xlu0 %v643, 96
        %v651 = vpop.permute.xlu0 %650
        %652 = vrot.lane.b32.xlu0 %v645, 96
        %v653 = vpop.permute.xlu0 %652
        %654 = vrot.lane.b32.xlu0 %v647, 96
        %v655 = vpop.permute.xlu0 %654
        %v660 = vrot.slane %v653, 4
        %v661 = vsel %vm527, %v660, %v649
        %v662 = vrot.slane %v649, 4
        %v663 = vsel %vm527, %v653, %v662
        %v665 = vunpack.c.l.s4 1983009808
        %v666 = vunpack.c.0.s8 %v665
        %v667 = vperm.slane %v661, %v666
        %v669 = vunpack.c.l.s4 1983009808
        %v670 = vunpack.c.0.s8 %v669
        %v671 = vperm.slane %v663, %v670
        %v672 = vrot.slane %v655, 4
        %v673 = vsel %vm527, %v672, %v651
        %v674 = vrot.slane %v651, 4
        %v675 = vsel %vm527, %v655, %v674
        %v677 = vunpack.c.l.s4 1983009808
        %v678 = vunpack.c.0.s8 %v677
        %v679 = vperm.slane %v673, %v678
        %v681 = vunpack.c.l.s4 1983009808
        %v682 = vunpack.c.0.s8 %v681
        %v683 = vperm.slane %v675, %v682
        %v684 = vrot.slane %v679, 4
        %v685 = vsel %vm527, %v684, %v667
        %v686 = vrot.slane %v667, 4
        %v687 = vsel %vm527, %v679, %v686
        %v689 = vunpack.c.l.s4 1934713408
        %v690 = vunpack.c.0.s8 %v689
        %v691 = vperm.slane %v685, %v690
        %v693 = vunpack.c.l.s4 1934713408
        %v694 = vunpack.c.0.s8 %v693
        %v695 = vperm.slane %v687, %v694
        %v696 = vrot.slane %v683, 4
        %v697 = vsel %vm527, %v696, %v671
        %v698 = vrot.slane %v671, 4
        %v699 = vsel %vm527, %v683, %v698
        %v701 = vunpack.c.l.s4 1934713408
        %v702 = vunpack.c.0.s8 %v701
        %v703 = vperm.slane %v697, %v702
        %v705 = vunpack.c.l.s4 1934713408
        %v706 = vunpack.c.0.s8 %v705
        %v707 = vperm.slane %v699, %v706
        %v708 = vrot.slane %v691, 4
        %v709 = vsel %vm527, 0.0, %v708
        %v710 = vrot.slane %v695, 4
        %v711 = vsel %vm527, 0.0, %v710
        %v712 = vrot.slane %v703, 4
        %v713 = vsel %vm527, 0.0, %v712
        %v714 = vrot.slane %v707, 4
        %v715 = vsel %vm527, 0.0, %v714
        %v716 = vsel %vm527, %v710, %v691
        %v718 = vunpack.c.l.s4 1983009808
        %v719 = vunpack.c.0.s8 %v718
        %v720 = vperm.slane %v716, %v719
        %v721 = vrot.slane %v711, 4
        %v722 = vsel %vm527, %v721, %v709
        %v724 = vunpack.c.l.s4 1983009808
        %v725 = vunpack.c.0.s8 %v724
        %v726 = vperm.slane %v722, %v725
        %v727 = vsel %vm527, %v714, %v703
        %v729 = vunpack.c.l.s4 1983009808
        %v730 = vunpack.c.0.s8 %v729
        %v731 = vperm.slane %v727, %v730
        %v732 = vrot.slane %v715, 4
        %v733 = vsel %vm527, %v732, %v713
        %v735 = vunpack.c.l.s4 1983009808
        %v736 = vunpack.c.0.s8 %v735
        %v737 = vperm.slane %v733, %v736
        %v738 = vrot.slane %v726, 4
        %v739 = vsel %vm527, %v738, %v720
        %v740 = vrot.slane %v720, 4
        %v741 = vsel %vm527, %v726, %v740
        %v743 = vunpack.c.l.s4 1934713408
        %v744 = vunpack.c.0.s8 %v743
        %v745 = vperm.slane %v739, %v744
        %v747 = vunpack.c.l.s4 1934713408
        %v748 = vunpack.c.0.s8 %v747
        %v749 = vperm.slane %v741, %v748
        %v750 = vrot.slane %v737, 4
        %v751 = vsel %vm527, %v750, %v731
        %v752 = vrot.slane %v731, 4
        %v753 = vsel %vm527, %v737, %v752
        %v755 = vunpack.c.l.s4 1934713408
        %v756 = vunpack.c.0.s8 %v755
        %v757 = vperm.slane %v751, %v756
        %v759 = vunpack.c.l.s4 1934713408
        %v760 = vunpack.c.0.s8 %v759
        %v761 = vperm.slane %v753, %v760
        %v762 = vrot.slane %v757, 4
        %v763 = vsel %vm527, %v762, %v745
        %v764 = vrot.slane %v745, 4
        %v765 = vsel %vm527, %v757, %v764
        %v766 = vrot.slane %v761, 4
        %v767 = vsel %vm527, %v766, %v749
        %v768 = vrot.slane %v749, 4
        %v769 = vsel %vm527, %v761, %v768
        %v770 = vpack.c.bf16 %v763, %v763
        %v771 = vpack.c.bf16 %v765, %v765
        %v772 = vpack.c.bf16 %v767, %v767
        %v773 = vpack.c.bf16 %v769, %v769
        %774 = vrot.lane.b32.xlu0 %v512, 64
        %v775 = vpop.permute.xlu0 %774
        %776 = vrot.lane.b32.xlu0 %v643, 64
        %v777 = vpop.permute.xlu0 %776
        %778 = vrot.lane.b32.xlu0 %v645, 64
        %v779 = vpop.permute.xlu0 %778
        %780 = vrot.lane.b32.xlu0 %v647, 64
        %v781 = vpop.permute.xlu0 %780
        %v786 = vrot.slane %v779, 4
        %v787 = vsel %vm527, %v786, %v775
        %v788 = vrot.slane %v775, 4
        %v789 = vsel %vm527, %v779, %v788
        %v791 = vunpack.c.l.s4 1983009808
        %v792 = vunpack.c.0.s8 %v791
        %v793 = vperm.slane %v787, %v792
        %v795 = vunpack.c.l.s4 1983009808
        %v796 = vunpack.c.0.s8 %v795
        %v797 = vperm.slane %v789, %v796
        %v798 = vrot.slane %v781, 4
        %v799 = vsel %vm527, %v798, %v777
        %v800 = vrot.slane %v777, 4
        %v801 = vsel %vm527, %v781, %v800
        %v803 = vunpack.c.l.s4 1983009808
        %v804 = vunpack.c.0.s8 %v803
        %v805 = vperm.slane %v799, %v804
        %v807 = vunpack.c.l.s4 1983009808
        %v808 = vunpack.c.0.s8 %v807
        %v809 = vperm.slane %v801, %v808
        %v810 = vrot.slane %v805, 4
        %v811 = vsel %vm527, %v810, %v793
        %v812 = vrot.slane %v793, 4
        %v813 = vsel %vm527, %v805, %v812
        %v815 = vunpack.c.l.s4 1934713408
        %v816 = vunpack.c.0.s8 %v815
        %v817 = vperm.slane %v811, %v816
        %v819 = vunpack.c.l.s4 1934713408
        %v820 = vunpack.c.0.s8 %v819
        %v821 = vperm.slane %v813, %v820
        %v822 = vrot.slane %v809, 4
        %v823 = vsel %vm527, %v822, %v797
        %v824 = vrot.slane %v797, 4
        %v825 = vsel %vm527, %v809, %v824
        %v827 = vunpack.c.l.s4 1934713408
        %v828 = vunpack.c.0.s8 %v827
        %v829 = vperm.slane %v823, %v828
        %v831 = vunpack.c.l.s4 1934713408
        %v832 = vunpack.c.0.s8 %v831
        %v833 = vperm.slane %v825, %v832
        %v834 = vrot.slane %v817, 4
        %v835 = vsel %vm527, 0.0, %v834
        %v836 = vrot.slane %v821, 4
        %v837 = vsel %vm527, 0.0, %v836
        %v838 = vrot.slane %v829, 4
        %v839 = vsel %vm527, 0.0, %v838
        %v840 = vrot.slane %v833, 4
        %v841 = vsel %vm527, 0.0, %v840
        %v842 = vsel %vm527, %v836, %v817
        %v844 = vunpack.c.l.s4 1983009808
        %v845 = vunpack.c.0.s8 %v844
        %v846 = vperm.slane %v842, %v845
        %v847 = vrot.slane %v837, 4
        %v848 = vsel %vm527, %v847, %v835
        %v850 = vunpack.c.l.s4 1983009808
        %v851 = vunpack.c.0.s8 %v850
        %v852 = vperm.slane %v848, %v851
        %v853 = vsel %vm527, %v840, %v829
        %v855 = vunpack.c.l.s4 1983009808
        %v856 = vunpack.c.0.s8 %v855
        %v857 = vperm.slane %v853, %v856
        %v858 = vrot.slane %v841, 4
        %v859 = vsel %vm527, %v858, %v839
        %v861 = vunpack.c.l.s4 1983009808
        %v862 = vunpack.c.0.s8 %v861
        %v863 = vperm.slane %v859, %v862
        %v864 = vrot.slane %v852, 4
        %v865 = vsel %vm527, %v864, %v846
        %v866 = vrot.slane %v846, 4
        %v867 = vsel %vm527, %v852, %v866
        %v869 = vunpack.c.l.s4 1934713408
        %v870 = vunpack.c.0.s8 %v869
        %v871 = vperm.slane %v865, %v870
        %v873 = vunpack.c.l.s4 1934713408
        %v874 = vunpack.c.0.s8 %v873
        %v875 = vperm.slane %v867, %v874
        %v876 = vrot.slane %v863, 4
        %v877 = vsel %vm527, %v876, %v857
        %v878 = vrot.slane %v857, 4
        %v879 = vsel %vm527, %v863, %v878
        %v881 = vunpack.c.l.s4 1934713408
        %v882 = vunpack.c.0.s8 %v881
        %v883 = vperm.slane %v877, %v882
        %v885 = vunpack.c.l.s4 1934713408
        %v886 = vunpack.c.0.s8 %v885
        %v887 = vperm.slane %v879, %v886
        %v888 = vrot.slane %v883, 4
        %v889 = vsel %vm527, %v888, %v871
        %v890 = vrot.slane %v871, 4
        %v891 = vsel %vm527, %v883, %v890
        %v892 = vrot.slane %v887, 4
        %v893 = vsel %vm527, %v892, %v875
        %v894 = vrot.slane %v875, 4
        %v895 = vsel %vm527, %v887, %v894
        %v896 = vpack.c.bf16 %v889, %v889
        %v897 = vpack.c.bf16 %v891, %v891
        %v898 = vpack.c.bf16 %v893, %v893
        %v899 = vpack.c.bf16 %v895, %v895
        %vm900 = vcmask 64512
        %v902 = vsel %vm900, %v637, 0
        %v905 = vsel %vm900, %v770, 0
        %907 = vmatpush.bf16.xpose.msra.mxu0 0
        %908 = vmatpush.bf16.xpose.msra.mxu0 0
        %909 = vmatpush.bf16.xpose.msra.mxu0 0
        %910 = vmatpush.bf16.xpose.msra.mxu0 0
        %911 = vmatpush.bf16.xpose.msra.mxu0 0
        %912 = vmatpush.bf16.xpose.msra.mxu0 0
        %913 = vmatpush.bf16.xpose.msra.mxu0 0
        %914 = vmatpush.bf16.xpose.msra.mxu0 %v905
        %915 = vmatmul.bf16.gmra.mxu0 %v902
        %v916 = vpop.f32.mrf.mxu0
        %v917 = vadd.f32 0.0, %v916
        %v918 = vpop.f32.mrf.mxu0
        %919 = vdwg.mxu0
        %v921 = vsel %vm900, %v638, 0
        %v924 = vsel %vm900, %v771, 0
        %926 = vmatpush.bf16.xpose.msra.mxu0 0
        %927 = vmatpush.bf16.xpose.msra.mxu0 0
        %928 = vmatpush.bf16.xpose.msra.mxu0 0
        %929 = vmatpush.bf16.xpose.msra.mxu0 0
        %930 = vmatpush.bf16.xpose.msra.mxu0 0
        %931 = vmatpush.bf16.xpose.msra.mxu0 0
        %932 = vmatpush.bf16.xpose.msra.mxu0 0
        %933 = vmatpush.bf16.xpose.msra.mxu0 %v924
        %934 = vmatmul.bf16.gmra.mxu0 %v921
        %v935 = vpop.f32.mrf.mxu0
        %v936 = vadd.f32 0.0, %v935
        %v937 = vpop.f32.mrf.mxu0
        %938 = vdwg.mxu0
        %v940 = vsel %vm900, %v639, 0
        %v943 = vsel %vm900, %v772, 0
        %945 = vmatpush.bf16.xpose.msra.mxu0 0
        %946 = vmatpush.bf16.xpose.msra.mxu0 0
        %947 = vmatpush.bf16.xpose.msra.mxu0 0
        %948 = vmatpush.bf16.xpose.msra.mxu0 0
        %949 = vmatpush.bf16.xpose.msra.mxu0 0
        %950 = vmatpush.bf16.xpose.msra.mxu0 0
        %951 = vmatpush.bf16.xpose.msra.mxu0 0
        %952 = vmatpush.bf16.xpose.msra.mxu0 %v943
        %953 = vmatmul.bf16.gmra.mxu0 %v940
        %v954 = vpop.f32.mrf.mxu0
        %v955 = vadd.f32 0.0, %v954
        %v956 = vpop.f32.mrf.mxu0
        %957 = vdwg.mxu0
        %v959 = vsel %vm900, %v640, 0
        %v962 = vsel %vm900, %v773, 0
        %964 = vmatpush.bf16.xpose.msra.mxu0 0
        %965 = vmatpush.bf16.xpose.msra.mxu0 0
        %966 = vmatpush.bf16.xpose.msra.mxu0 0
        %967 = vmatpush.bf16.xpose.msra.mxu0 0
        %968 = vmatpush.bf16.xpose.msra.mxu0 0
        %969 = vmatpush.bf16.xpose.msra.mxu0 0
        %970 = vmatpush.bf16.xpose.msra.mxu0 0
        %971 = vmatpush.bf16.xpose.msra.mxu0 %v962
        %972 = vmatmul.bf16.gmra.mxu0 %v959
        %v973 = vpop.f32.mrf.mxu0
        %v974 = vadd.f32 0.0, %v973
        %v975 = vpop.f32.mrf.mxu0
        %976 = vdwg.mxu0
        %v977 = vsel %vm900, %v917, -inf
        %978 = vmax.xlane.f32.xlu0 %v977
        %v979 = vpop.xlane.xlu0 %978
        %v980 = vsel %vm900, %v936, -inf
        %981 = vmax.xlane.f32.xlu0 %v980
        %v982 = vpop.xlane.xlu0 %981
        %v983 = vsel %vm900, %v955, -inf
        %984 = vmax.xlane.f32.xlu0 %v983
        %v985 = vpop.xlane.xlu0 %984
        %v986 = vsel %vm900, %v974, -inf
        %987 = vmax.xlane.f32.xlu0 %v986
        %v988 = vpop.xlane.xlu0 %987
        %v989 = vsub.f32 %v917, %v979
        %v990 = vsub.f32 %v936, %v982
        %v991 = vsub.f32 %v955, %v985
        %v992 = vsub.f32 %v974, %v988
        %v993 = vmul.f32 %v989, 1.442695
        %v994 = vpow.pop %v993
        %v995 = vmul.f32 %v990, 1.442695
        %v996 = vpow.pop %v995
        %v997 = vmul.f32 %v991, 1.442695
        %v998 = vpow.pop %v997
        %v999 = vmul.f32 %v992, 1.442695
        %v1000 = vpow.pop %v999
        %v1001 = vsel %vm900, %v994, 0.0
        %1002 = vadd.xlane.f32.xlu0 %v1001
        %v1003 = vpop.xlane.xlu0 %1002
        %v1004 = vsel %vm900, %v996, 0.0
        %1005 = vadd.xlane.f32.xlu0 %v1004
        %v1006 = vpop.xlane.xlu0 %1005
        %v1007 = vsel %vm900, %v998, 0.0
        %1008 = vadd.xlane.f32.xlu0 %v1007
        %v1009 = vpop.xlane.xlu0 %1008
        %v1010 = vsel %vm900, %v1000, 0.0
        %1011 = vadd.xlane.f32.xlu0 %v1010
        %v1012 = vpop.xlane.xlu0 %1011
        %v1013 = vrcp.pop %v1003
        %v1014 = vrcp.pop %v1006
        %v1015 = vrcp.pop %v1009
        %v1016 = vrcp.pop %v1012
        %v1017 = vmul.f32 %v994, %v1013
        %v1018 = vmul.f32 %v996, %v1014
        %v1019 = vmul.f32 %v998, %v1015
        %v1020 = vmul.f32 %v1000, %v1016
        %v1021 = vpack.c.bf16 %v1017, %v1017
        %v1022 = vpack.c.bf16 %v1018, %v1018
        %v1023 = vpack.c.bf16 %v1019, %v1019
        %v1024 = vpack.c.bf16 %v1020, %v1020
        %v1026 = vsel %vm900, %v1021, 0
        %vm1028 = vcmask 1043456
        %v1030 = vsel %vm1028, %v896, 0
        %1032 = vmatpush.bf16.msra.mxu0 0
        %1033 = vmatpush.bf16.msra.mxu0 0
        %1034 = vmatpush.bf16.msra.mxu0 0
        %1035 = vmatpush.bf16.msra.mxu0 0
        %1036 = vmatpush.bf16.msra.mxu0 0
        %1037 = vmatpush.bf16.msra.mxu0 0
        %1038 = vmatpush.bf16.msra.mxu0 0
        %1039 = vmatpush.bf16.msra.mxu0 %v1030
        %1040 = vmatmul.bf16.gmra.mxu0 %v1026
        %v1041 = vpop.f32.mrf.mxu0
        %v1042 = vadd.f32 0.0, %v1041
        %v1043 = vpop.f32.mrf.mxu0
        %1044 = vdwg.mxu0
        %v1046 = vsel %vm900, %v1022, 0
        %v1049 = vsel %vm1028, %v897, 0
        %1051 = vmatpush.bf16.msra.mxu0 0
        %1052 = vmatpush.bf16.msra.mxu0 0
        %1053 = vmatpush.bf16.msra.mxu0 0
        %1054 = vmatpush.bf16.msra.mxu0 0
        %1055 = vmatpush.bf16.msra.mxu0 0
        %1056 = vmatpush.bf16.msra.mxu0 0
        %1057 = vmatpush.bf16.msra.mxu0 0
        %1058 = vmatpush.bf16.msra.mxu0 %v1049
        %1059 = vmatmul.bf16.gmra.mxu0 %v1046
        %v1060 = vpop.f32.mrf.mxu0
        %v1061 = vadd.f32 0.0, %v1060
        %v1062 = vpop.f32.mrf.mxu0
        %1063 = vdwg.mxu0
        %v1065 = vsel %vm900, %v1023, 0
        %v1068 = vsel %vm1028, %v898, 0
        %1070 = vmatpush.bf16.msra.mxu0 0
        %1071 = vmatpush.bf16.msra.mxu0 0
        %1072 = vmatpush.bf16.msra.mxu0 0
        %1073 = vmatpush.bf16.msra.mxu0 0
        %1074 = vmatpush.bf16.msra.mxu0 0
        %1075 = vmatpush.bf16.msra.mxu0 0
        %1076 = vmatpush.bf16.msra.mxu0 0
        %1077 = vmatpush.bf16.msra.mxu0 %v1068
        %1078 = vmatmul.bf16.gmra.mxu0 %v1065
        %v1079 = vpop.f32.mrf.mxu0
        %v1080 = vadd.f32 0.0, %v1079
        %v1081 = vpop.f32.mrf.mxu0
        %1082 = vdwg.mxu0
        %v1084 = vsel %vm900, %v1024, 0
        %v1087 = vsel %vm1028, %v899, 0
        %1089 = vmatpush.bf16.msra.mxu0 0
        %1090 = vmatpush.bf16.msra.mxu0 0
        %1091 = vmatpush.bf16.msra.mxu0 0
        %1092 = vmatpush.bf16.msra.mxu0 0
        %1093 = vmatpush.bf16.msra.mxu0 0
        %1094 = vmatpush.bf16.msra.mxu0 0
        %1095 = vmatpush.bf16.msra.mxu0 0
        %1096 = vmatpush.bf16.msra.mxu0 %v1087
        %1097 = vmatmul.bf16.gmra.mxu0 %v1084
        %v1098 = vpop.f32.mrf.mxu0
        %v1099 = vadd.f32 0.0, %v1098
        %v1100 = vpop.f32.mrf.mxu0
        %1101 = vdwg.mxu0
        %v1102 = vrot.slane %v1080, 4
        %v1103 = vsel %vm527, %v1102, %v1042
        %v1104 = vrot.slane %v1042, 4
        %v1105 = vsel %vm527, %v1080, %v1104
        %v1107 = vunpack.c.l.s4 1983009808
        %v1108 = vunpack.c.0.s8 %v1107
        %v1109 = vperm.slane %v1103, %v1108
        %v1111 = vunpack.c.l.s4 1983009808
        %v1112 = vunpack.c.0.s8 %v1111
        %v1113 = vperm.slane %v1105, %v1112
        %v1114 = vrot.slane %v1099, 4
        %v1115 = vsel %vm527, %v1114, %v1061
        %v1116 = vrot.slane %v1061, 4
        %v1117 = vsel %vm527, %v1099, %v1116
        %v1119 = vunpack.c.l.s4 1983009808
        %v1120 = vunpack.c.0.s8 %v1119
        %v1121 = vperm.slane %v1115, %v1120
        %v1123 = vunpack.c.l.s4 1983009808
        %v1124 = vunpack.c.0.s8 %v1123
        %v1125 = vperm.slane %v1117, %v1124
        %v1126 = vrot.slane %v1121, 4
        %v1127 = vsel %vm527, %v1126, %v1109
        %v1128 = vrot.slane %v1109, 4
        %v1129 = vsel %vm527, %v1121, %v1128
        %v1131 = vunpack.c.l.s4 1934713408
        %v1132 = vunpack.c.0.s8 %v1131
        %v1133 = vperm.slane %v1127, %v1132
        %v1135 = vunpack.c.l.s4 1934713408
        %v1136 = vunpack.c.0.s8 %v1135
        %v1137 = vperm.slane %v1129, %v1136
        %v1138 = vrot.slane %v1125, 4
        %v1139 = vsel %vm527, %v1138, %v1113
        %v1140 = vrot.slane %v1113, 4
        %v1141 = vsel %vm527, %v1125, %v1140
        %v1143 = vunpack.c.l.s4 1934713408
        %v1144 = vunpack.c.0.s8 %v1143
        %v1145 = vperm.slane %v1139, %v1144
        %v1147 = vunpack.c.l.s4 1934713408
        %v1148 = vunpack.c.0.s8 %v1147
        %v1149 = vperm.slane %v1141, %v1148
        %v1150 = vrot.slane %v1133, 4
        %v1151 = vsel %vm527, 0.0, %v1150
        %v1152 = vrot.slane %v1137, 4
        %v1153 = vsel %vm527, 0.0, %v1152
        %v1154 = vrot.slane %v1145, 4
        %v1155 = vsel %vm527, 0.0, %v1154
        %v1156 = vrot.slane %v1149, 4
        %v1157 = vsel %vm527, 0.0, %v1156
        %v1158 = vsel %vm527, %v1152, %v1133
        %v1160 = vunpack.c.l.s4 1983009808
        %v1161 = vunpack.c.0.s8 %v1160
        %v1162 = vperm.slane %v1158, %v1161
        %v1163 = vrot.slane %v1153, 4
        %v1164 = vsel %vm527, %v1163, %v1151
        %v1166 = vunpack.c.l.s4 1983009808
        %v1167 = vunpack.c.0.s8 %v1166
        %v1168 = vperm.slane %v1164, %v1167
        %v1169 = vsel %vm527, %v1156, %v1145
        %v1171 = vunpack.c.l.s4 1983009808
        %v1172 = vunpack.c.0.s8 %v1171
        %v1173 = vperm.slane %v1169, %v1172
        %v1174 = vrot.slane %v1157, 4
        %v1175 = vsel %vm527, %v1174, %v1155
        %v1177 = vunpack.c.l.s4 1983009808
        %v1178 = vunpack.c.0.s8 %v1177
        %v1179 = vperm.slane %v1175, %v1178
        %v1180 = vrot.slane %v1168, 4
        %v1181 = vsel %vm527, %v1180, %v1162
        %v1182 = vrot.slane %v1162, 4
        %v1183 = vsel %vm527, %v1168, %v1182
        %v1185 = vunpack.c.l.s4 1934713408
        %v1186 = vunpack.c.0.s8 %v1185
        %v1187 = vperm.slane %v1181, %v1186
        %v1189 = vunpack.c.l.s4 1934713408
        %v1190 = vunpack.c.0.s8 %v1189
        %v1191 = vperm.slane %v1183, %v1190
        %v1192 = vrot.slane %v1179, 4
        %v1193 = vsel %vm527, %v1192, %v1173
        %v1194 = vrot.slane %v1173, 4
        %v1195 = vsel %vm527, %v1179, %v1194
        %v1197 = vunpack.c.l.s4 1934713408
        %v1198 = vunpack.c.0.s8 %v1197
        %v1199 = vperm.slane %v1193, %v1198
        %v1201 = vunpack.c.l.s4 1934713408
        %v1202 = vunpack.c.0.s8 %v1201
        %v1203 = vperm.slane %v1195, %v1202
        %v1204 = vrot.slane %v1199, 4
        %v1205 = vsel %vm527, %v1204, %v1187
        %v1206 = vrot.slane %v1187, 4
        %v1207 = vsel %vm527, %v1199, %v1206
        %v1208 = vrot.slane %v1203, 4
        %v1209 = vsel %vm527, %v1208, %v1191
        %v1210 = vrot.slane %v1191, 4
        %v1211 = vsel %vm527, %v1203, %v1210
        %1213 = vrot.lane.b32.xlu0 %v1207, 8
        %v1214 = vpop.permute.xlu0 %1213
        %1217 = vrot.lane.b32.xlu0 %v1209, 16
        %v1218 = vpop.permute.xlu0 %1217
        %1221 = vrot.lane.b32.xlu0 %v1211, 24
        %v1222 = vpop.permute.xlu0 %1221
        %v1224 = vsel %vm900, %v1205, %v1214
        %vm1225 = vcmask 130048
        %v1226 = vsel %vm1225, %v1224, %v1218
        %vm1227 = vcmask 195584
        %v1228 = vsel %vm1227, %v1226, %v1222
        %v1229 = vpack.c.bf16 %v1228, %v1228
        %v1230 = vld [vmem:[%s7] sm:$0xf]
        %v1231 = vld [vmem:[%s7 + $0x4] sm:$0xf]
        %v1232 = vld [vmem:[%s7 + $0x8] sm:$0xf]
        %v1233 = vld [vmem:[%s7 + $0xc] sm:$0xf]
        %v1234 = vld [vmem:[%s8] sm:$0x1]
        %v1236 = vperm.slane %v1234, 0
        %v1242 = vunpack.c.l.b16 %v1230
        %v1243 = vunpack.c.l.b16 %v1231
        %v1244 = vunpack.c.l.b16 %v1232
        %v1245 = vunpack.c.l.b16 %v1233
        %v1246 = vpack.c.b16 %v1243, %v1242
        %v1247 = vpack.c.b16 %v1245, %v1244
        %v1251 = vsel %vm440, %v1229, 0
        %1253 = vmatpush.bf16.msra.mxu0 0
        %1254 = vmatpush.bf16.msra.mxu0 0
        %1255 = vmatpush.bf16.msra.mxu0 0
        %1256 = vmatpush.bf16.msra.mxu0 0
        %1257 = vmatpush.bf16.msra.mxu0 0
        %1258 = vmatpush.bf16.msra.mxu0 0
        %1259 = vmatpush.bf16.msra.mxu0 %v1247
        %1260 = vmatpush.bf16.msra.mxu0 %v1246
        %1261 = vmatmul.bf16.gmra.mxu0 %v1251
        %v1262 = vpop.f32.mrf.mxu0
        %v1263 = vadd.f32 %v1236, %v1262
        %v1264 = vpop.f32.mrf.mxu0
        %1265 = vdwg.mxu0
        %v1266 = vadd.f32 %v437, %v1263
        %v1267 = vld [vmem:[%s3] sm:$0x1]
        %v1268 = vld [vmem:[%s4] sm:$0x1]
        %v1269 = vsel %vm440, %v1266, 0.0
        %1270 = vadd.xlane.f32.xlu0 %v1269
        %v1271 = vpop.xlane.xlu0 %1270
        %v1272 = vmul.f32 %v1271, %v450
        %v1273 = vsub.f32 %v1266, %v1272
        %v1274 = vmul.f32 %v1273, %v1273
        %v1275 = vsel %vm440, %v1274, 0.0
        %1276 = vadd.xlane.f32.xlu0 %v1275
        %v1277 = vpop.xlane.xlu0 %1276
        %v1278 = vmul.f32 %v1277, %v450
        %v1279 = vadd.f32 %v1278, 1e-05
        %v1280 = vrsqrt.pop %v1279
        %v1281 = vmul.f32 %v1280, %v1279
        %v1282 = vmul.f32 %v1281, %v1280
        %v1283 = vmul.f32 0.5, %v1282
        %v1284 = vsub.f32 1.5, %v1283
        %v1285 = vmul.f32 %v1280, %v1284
        %vm1286 = vweird.f32 %v1279
        %vm1287 = vweird.f32 %v1280
        %vm1288 = vmor %vm1286, %vm1287
        %v1289 = vsel %vm1288, %v1280, %v1285
        %v1290 = vmul.f32 %v1273, %v1289
        %v1292 = vperm.slane %v1267, 0
        %v1294 = vmul.f32 %v1290, %v1292
        %v1296 = vperm.slane %v1268, 0
        %v1298 = vadd.f32 %v1294, %v1296
        %v1299 = vpack.c.bf16 %v1298, %v1298
        %v1300 = vld [vmem:[%s9] sm:$0xf]
        %v1301 = vld [vmem:[%s9 + $0x4] sm:$0xf]
        %v1302 = vld [vmem:[%s9 + $0x8] sm:$0xf]
        %v1303 = vld [vmem:[%s9 + $0xc] sm:$0xf]
        %v1304 = vld [vmem:[%s10] sm:$0x1]
        %v1306 = vperm.slane %v1304, 0
        %v1312 = vunpack.c.l.b16 %v1300
        %v1313 = vunpack.c.l.b16 %v1301
        %v1314 = vunpack.c.l.b16 %v1302
        %v1315 = vunpack.c.l.b16 %v1303
        %v1316 = vpack.c.b16 %v1313, %v1312
        %v1317 = vpack.c.b16 %v1315, %v1314
        %v1321 = vsel %vm440, %v1299, 0
        %1323 = vmatpush.bf16.msra.mxu0 0
        %1324 = vmatpush.bf16.msra.mxu0 0
        %1325 = vmatpush.bf16.msra.mxu0 0
        %1326 = vmatpush.bf16.msra.mxu0 0
        %1327 = vmatpush.bf16.msra.mxu0 0
        %1328 = vmatpush.bf16.msra.mxu0 0
        %1329 = vmatpush.bf16.msra.mxu0 %v1317
        %1330 = vmatpush.bf16.msra.mxu0 %v1316
        %1331 = vmatmul.bf16.gmra.mxu0 %v1321
        %v1332 = vpop.f32.mrf.mxu0
        %v1333 = vadd.f32 %v1306, %v1332
        %v1334 = vpop.f32.mrf.mxu0
        %1335 = vdwg.mxu0
        %v1336 = vmul.f32 %v1333, 0.5
        %v1337 = vmul.f32 %v1333, 0.70710677
        %v1338 = vmul.f32 %v1337, %v1337
        %v1339 = vmin.f32 16.0, %v1338
        %v1340 = vmul.f32 %v1339, 2.1237322e-06
        %v1341 = vadd.f32 %v1340, 0.00028619796
        %v1342 = vmul.f32 %v1339, %v1341
        %v1343 = vadd.f32 %v1342, 0.0036580483
        %v1344 = vmul.f32 %v1339, %v1343
        %v1345 = vadd.f32 %v1344, 0.05243302
        %v1346 = vmul.f32 %v1339, %v1345
        %v1347 = vadd.f32 %v1346, 0.18741608
        %v1348 = vmul.f32 %v1339, %v1347
        %v1349 = vadd.f32 %v1348, 1.1283791
        %v1350 = vmul.f32 %v1337, %v1349
        %v1351 = vmul.f32 %v1339, 3.8918573e-05
        %v1352 = vadd.f32 %v1351, 0.001143296
        %v1353 = vmul.f32 %v1339, %v1352
        %v1354 = vadd.f32 %v1353, 0.014752088
        %v1355 = vmul.f32 %v1339, %v1354
        %v1356 = vadd.f32 %v1355, 0.112945676
        %v1357 = vmul.f32 %v1339, %v1356
        %v1358 = vadd.f32 %v1357, 0.4994258
        %v1359 = vmul.f32 %v1339, %v1358
        %v1360 = vadd.f32 %v1359, 1.0
        %v1361 = vrcp.pop %v1360
        %v1362 = vmul.f32 %v1360, %v1361
        %v1363 = vsub.f32 1.0, %v1362
        %v1364 = vmul.f32 %v1361, %v1363
        %v1365 = vadd.f32 %v1361, %v1364
        %vm1366 = vweird.f32 %v1360
        %vm1367 = vweird.f32 %v1361
        %vm1368 = vmor %vm1366, %vm1367
        %v1369 = vsel %vm1368, %v1361, %v1365
        %v1370 = vand.u32 2147483647, %v1360
        %vm1371 = vcmp.eq.f32.partialorder %v1370, 8.507059e+37
        %v1372 = vand.u32 %v1360, 2147483648
        %v1373 = vor.u32 1.1754944e-38, %v1372
        %v1374 = vsel %vm1371, %v1373, %v1369
        %v1375 = vmul.f32 %v1350, %v1374
        %v1376 = vmin.f32 %v1375, 1.0
        %v1377 = vmax.f32 %v1376, -1.0
        %v1378 = vadd.f32 %v1377, 1.0
        %v1379 = vmul.f32 %v1336, %v1378
        %v1380 = vpack.c.bf16 %v1379, %v1379
        %v1381 = vld [vmem:[%s11] sm:$0xf]
        %v1382 = vld [vmem:[%s11 + $0x4] sm:$0xf]
        %v1383 = vld [vmem:[%s11 + $0x8] sm:$0xf]
        %v1384 = vld [vmem:[%s11 + $0xc] sm:$0xf]
        %v1385 = vld [vmem:[%s11 + $0x10] sm:$0xf]
        %v1386 = vld [vmem:[%s11 + $0x14] sm:$0xf]
        %v1387 = vld [vmem:[%s11 + $0x18] sm:$0xf]
        %v1388 = vld [vmem:[%s11 + $0x1c] sm:$0xf]
        %v1389 = vld [vmem:[%s11 + $0x20] sm:$0xf]
        %v1390 = vld [vmem:[%s11 + $0x24] sm:$0xf]
        %v1391 = vld [vmem:[%s11 + $0x28] sm:$0xf]
        %v1392 = vld [vmem:[%s11 + $0x2c] sm:$0xf]
        %v1393 = vld [vmem:[%s11 + $0x30] sm:$0xf]
        %v1394 = vld [vmem:[%s11 + $0x34] sm:$0xf]
        %v1395 = vld [vmem:[%s11 + $0x38] sm:$0xf]
        %v1396 = vld [vmem:[%s11 + $0x3c] sm:$0xf]
        %v1397 = vld [vmem:[%s12] sm:$0x1]
        %v1399 = vperm.slane %v1397, 0
        %v1417 = vunpack.c.l.b16 %v1381
        %v1418 = vunpack.c.l.b16 %v1382
        %v1419 = vunpack.c.l.b16 %v1383
        %v1420 = vunpack.c.l.b16 %v1384
        %v1421 = vunpack.c.l.b16 %v1385
        %v1422 = vunpack.c.l.b16 %v1386
        %v1423 = vunpack.c.l.b16 %v1387
        %v1424 = vunpack.c.l.b16 %v1388
        %v1425 = vunpack.c.l.b16 %v1389
        %v1426 = vunpack.c.l.b16 %v1390
        %v1427 = vunpack.c.l.b16 %v1391
        %v1428 = vunpack.c.l.b16 %v1392
        %v1429 = vunpack.c.l.b16 %v1393
        %v1430 = vunpack.c.l.b16 %v1394
        %v1431 = vunpack.c.l.b16 %v1395
        %v1432 = vunpack.c.l.b16 %v1396
        %v1433 = vpack.c.b16 %v1418, %v1417
        %v1434 = vpack.c.b16 %v1420, %v1419
        %v1435 = vpack.c.b16 %v1422, %v1421
        %v1436 = vpack.c.b16 %v1424, %v1423
        %v1437 = vpack.c.b16 %v1426, %v1425
        %v1438 = vpack.c.b16 %v1428, %v1427
        %v1439 = vpack.c.b16 %v1430, %v1429
        %v1440 = vpack.c.b16 %v1432, %v1431
        %1449 = vmatpush.bf16.msra.mxu0 %v1440
        %1450 = vmatpush.bf16.msra.mxu0 %v1439
        %1451 = vmatpush.bf16.msra.mxu0 %v1438
        %1452 = vmatpush.bf16.msra.mxu0 %v1437
        %1453 = vmatpush.bf16.msra.mxu0 %v1436
        %1454 = vmatpush.bf16.msra.mxu0 %v1435
        %1455 = vmatpush.bf16.msra.mxu0 %v1434
        %1456 = vmatpush.bf16.msra.mxu0 %v1433
        %1457 = vmatmul.bf16.gmra.mxu0 %v1380
        %v1458 = vpop.f32.mrf.mxu0
        %v1459 = vadd.f32 %v1399, %v1458
        %v1460 = vpop.f32.mrf.mxu0
        %1461 = vdwg.mxu0
        %v1462 = vadd.f32 %v1266, %v1459
        %1463 = vst.msk [vmem:[%s431] sm:$0xff] %vm440, %v1462
        %s1464 = sand.u32 %s313, 1
        %s1465 = scalar_lea.sflag [#allocation3], %s1464
        %s1466 = sand.u32 %s313, 1
        %s1467 = smul.addr %s1466, 8
        %s1468 = scalar_lea.vmem [#allocation2], %s1467
        // Predicated region
        $region73: #{tpu_custom_call.1} parent=71 // pred_check
          %p1469 = pneg %p323
        $region74: #{tpu_custom_call.1} parent=71 // pred_check_branch
          %1471 = sbr.rel (%p1469) target = $region76
        $region75: #{tpu_custom_call.1} parent=71 // pred_region
          %1473 = vsyncadd %s1465, 0
          %s1474 = smul.addr %s27, 8
          %s1475 = scalar_lea.hbm %s13, %s1474
          %s1477 = sshll.u32 %s1468, 4
          %s1478 = int_to_ptr.vmem [resolvable:$true] %s1477
          %s1479 = sshll.u32 %s1475, 4
          %s1480 = int_to_ptr.hbm [resolvable:$true] %s1479
          %1482 = dma.vmem_to_hbm [thread:$0]  %s1478, 128, %s1480, %s1465
        $region76: #{tpu_custom_call.1} parent=71 // pred_fallthru
          _
      $region72: #{tpu_custom_call.1} parent=5 // pred_fallthru
        _
      %p1483 = scmp.le.s32.totalorder 2, %s22
      // Predicated region
      $region77: #{tpu_custom_call.1} parent=5 // pred_check
        %p1484 = pneg %p1483
      $region78: #{tpu_custom_call.1} parent=5 // pred_check_branch
        %1486 = sbr.rel (%p1484) target = $region80
      $region79: #{tpu_custom_call.1} parent=5 // pred_region
        %s1487 = ssub.s32 %s22, 2
        // Predicated region
        $region81: #{tpu_custom_call.1} parent=79 // pred_check
          %p1488 = pneg %p329
        $region82: #{tpu_custom_call.1} parent=79 // pred_check_branch
          %1490 = sbr.rel (%p1488) target = $region84
        $region83: #{tpu_custom_call.1} parent=79 // pred_region
          %s1491 = sand.u32 %s314, 1
          %s1492 = scalar_lea.sflag [#allocation3], %s1491
          %s1493 = sand.u32 %s314, 1
          %s1494 = smul.addr %s1493, 8
          %s1495 = scalar_lea.vmem [#allocation2], %s1494
          %1497 = dma.done %s1492, 128
        $region84: #{tpu_custom_call.1} parent=79 // pred_fallthru
          _
      $region80: #{tpu_custom_call.1} parent=5 // pred_fallthru
        _
    $region6: #{tpu_custom_call.1} parent=1 // loop_footer
      %s26 = sadd.s32 1, %s22
    $region7: #{tpu_custom_call.1} parent=1 // loop_footer_branch
      %21 = sbr.rel target = $region3
    $region8: #{tpu_custom_call.1} parent=1 // loop_exit
      _
    %1498 = vsyncpa [#allocation3], 1
    %s1499 = scalar_lea.sflag [#allocation3], 1
    %1500 = vsyncpa %s1499, 1

</llo_original>
